<compile_context>
chip_gen: v7x
topology: tpu7x:2x2x1
jax: 0.10.0
libtpu: 0.0.40
codegen_flags: <defaults>
</compile_context>

<pallas_src>
import math
import functools

import jax
import jax.numpy as jnp
from jax import lax
from jax.experimental import pallas as pl
from jax.experimental.pallas import tpu as pltpu

# ---- model config (small but consistent with the module) -------------------
NUM_FEATURES = 32          # vocabulary size (NF)
DIM          = 8           # embedding dim (D)
NUM_FIELDS   = 4           # F ;  F * NF = 128 == one lane width / MXU K dim
DEEP_LAYERS  = (32, 16)
BATCH        = 256
TILE_B       = 128         # batch tile -> grid=(BATCH // TILE_B,)
# module quirk: out_dim += deep_layers[-1] runs (num_deep_layers - 1) times
OUT_DIM = DIM + NUM_FIELDS + (len(DEEP_LAYERS) - 1) * DEEP_LAYERS[-1]


def deepfm_kernel(x_ref, tbl_ref, w0_ref, b0_ref, w1_ref, b1_ref,
                  wpq_ref, wpu_ref, wpd_ref, bp_ref, o_ref):
    TB, F = x_ref.shape
    K = tbl_ref.shape[0]                     # F * NF (= 128)
    NF = K // F
    D = wpq_ref.shape[0]
    FD = F * D

    x = x_ref[...]                                            # (TB, F) int32

    # Fused one-hot over all fields: column f*NF + x[:, f] is 1.
    col = lax.broadcasted_iota(jnp.int32, (TB, K), 1)         # (TB, 128)
    onehot = jnp.zeros((TB, K), jnp.float32)
    for f in range(F):                                        # 4 VPU compares
        onehot = onehot + ((x[:, f:f + 1] + f * NF) == col).astype(jnp.float32)

    # One MXU matmul -> [deep input | unary | sum(e) | sum(e^2)]
    fused = jnp.dot(onehot, tbl_ref[...],
                    preferred_element_type=jnp.float32)       # (TB, FD+F+2D)
    y     = fused[:, :FD]                                     # (TB, F*D)
    unary = fused[:, FD:FD + F]                               # (TB, F)
    s     = fused[:, FD + F:FD + F + D]                       # (TB, D)
    ss    = fused[:, FD + F + D:FD + F + 2 * D]               # (TB, D)

    # FM second-order term: 0.5 * ((sum e)^2 - sum e^2)
    quad = 0.5 * (s * s - ss)                                 # (TB, D)

    # deep tower (deep_activation = ReLU)
    h = jnp.dot(y, w0_ref[...], preferred_element_type=jnp.float32) + b0_ref[...]
    h = jnp.maximum(h, 0.0)
    h = jnp.dot(h, w1_ref[...], preferred_element_type=jnp.float32) + b1_ref[...]
    h = jnp.maximum(h, 0.0)

    # projection with split row-blocks of wp (no lane-axis concatenate)
    logits = (jnp.dot(quad,  wpq_ref[...], preferred_element_type=jnp.float32)
              + jnp.dot(unary, wpu_ref[...], preferred_element_type=jnp.float32)
              + jnp.dot(h,     wpd_ref[...], preferred_element_type=jnp.float32)
              + bp_ref[...])                                  # (TB, 2)

    # pair-wise log-softmax over the 2 classes (VPU only, no XLU reduce)
    l0 = logits[:, 0:1]
    l1 = logits[:, 1:2]
    m = jnp.maximum(l0, l1)
    lse = m + jnp.log(jnp.exp(l0 - m) + jnp.exp(l1 - m))      # (TB, 1)
    o_ref[...] = logits - lse


def build_fused_table(emb, unary):
    """(F*NF, F*D + F + 2D): [block-diag emb | block-diag unary | emb | emb^2]."""
    F = NUM_FIELDS
    eye = jnp.eye(F, dtype=emb.dtype)
    deep_blk  = jnp.kron(eye, emb)             # (F*NF, F*D) block-diagonal
    unary_blk = jnp.kron(eye, unary)           # (F*NF, F)
    sum_blk   = jnp.tile(emb, (F, 1))          # (F*NF, D)
    sq_blk    = jnp.tile(emb * emb, (F, 1))    # (F*NF, D)
    return jnp.concatenate([deep_blk, unary_blk, sum_blk, sq_blk], axis=1)


@functools.partial(jax.jit, static_argnames=("tile_b",))
def deepfm_forward(x, params, *, tile_b=TILE_B):
    B, F = x.shape
    D = params["emb"].shape[1]
    assert B % tile_b == 0, (B, tile_b)

    tbl = build_fused_table(params["emb"], params["unary"])   # (128, 52)
    wp = params["wp"]
    wpq, wpu, wpd = wp[:D], wp[D:D + F], wp[D + F:]

    weights = (tbl, params["w0"], params["b0"], params["w1"], params["b1"],
               wpq, wpu, wpd, params["bp"])

    def resident(w):
        nd = w.ndim
        return pl.BlockSpec(w.shape, lambda i, _nd=nd: (0,) * _nd)

    return pl.pallas_call(
        deepfm_kernel,
        out_shape=jax.ShapeDtypeStruct((B, 2), jnp.float32),
        grid=(B // tile_b,),
        in_specs=[pl.BlockSpec((tile_b, F), lambda i: (i, 0))]
                 + [resident(w) for w in weights],
        out_specs=pl.BlockSpec((tile_b, 2), lambda i: (i, 0)),
        compiler_params=pltpu.CompilerParams(
            dimension_semantics=("parallel",)),
    )(x, *weights)


# ---- deterministic parameter init (glorot-style, matching the module) ------
def init_params(key):
    ks = jax.random.split(key, 8)

    def uni(k, shape, scale):
        return jax.random.uniform(k, shape, jnp.float32, -scale, scale)

    emb_scale = math.sqrt(2.0 / (1.0 + NUM_FEATURES * DIM))   # Embedding glorot
    un_scale = math.sqrt(2.0 / (1.0 + NUM_FEATURES * 1))
    in0 = NUM_FIELDS * DIM
    h0, h1 = DEEP_LAYERS
    return dict(
        emb=uni(ks[0], (NUM_FEATURES, DIM), emb_scale),
        unary=uni(ks[1], (NUM_FEATURES, 1), un_scale),
        w0=uni(ks[2], (in0, h0), math.sqrt(2.0 / (in0 + h0))),
        b0=uni(ks[3], (1, h0), 1.0 / math.sqrt(in0)),
        w1=uni(ks[4], (h0, h1), math.sqrt(2.0 / (h0 + h1))),
        b1=uni(ks[5], (1, h1), 1.0 / math.sqrt(h0)),
        wp=uni(ks[6], (OUT_DIM, 2), math.sqrt(2.0 / (OUT_DIM + 2))),
        bp=uni(ks[7], (1, 2), 1.0 / math.sqrt(OUT_DIM)),
    )


# ---- pure-JAX reference (same math, gather-based) ---------------------------
def deepfm_reference(x, p):
    emb = p["emb"][x]                                     # (B, F, D)
    s = emb.sum(axis=1)
    ss = (emb * emb).sum(axis=1)
    quad = 0.5 * (s * s - ss)
    unary = p["unary"][x][..., 0]                         # (B, F)
    y = emb.reshape(x.shape[0], NUM_FIELDS * DIM)
    y = jnp.maximum(y @ p["w0"] + p["b0"], 0.0)
    y = jnp.maximum(y @ p["w1"] + p["b1"], 0.0)
    out = jnp.concatenate([quad, unary, y], axis=1)
    logits = out @ p["wp"] + p["bp"]
    return jax.nn.log_softmax(logits, axis=1)


if __name__ == "__main__":
    key = jax.random.PRNGKey(0)
    k_x, k_p = jax.random.split(key)
    x = jax.random.randint(k_x, (BATCH, NUM_FIELDS), 0, NUM_FEATURES,
                           dtype=jnp.int32)
    params = init_params(k_p)

    out = jax.block_until_ready(deepfm_forward(x, params))
    ref = deepfm_reference(x, params)

    assert out.shape == (BATCH, 2), out.shape
    assert bool(jnp.all(jnp.isfinite(out)))
    assert jnp.allclose(out, ref, rtol=1e-3, atol=1e-3), (out, ref)

    # TODO(synk): cast the fused table / MLP weights to bf16 for v6e/v7x at
    # production batch sizes (kept f32 here for tight reference comparison).
    print("KERNEL_OK")
</pallas_src>

<mosaic_0001>
module attributes {stable_mosaic.version = 11 : i64} {
  func.func @deepfm_kernel(%arg0: i32, %arg1: memref<128x4xi32, #tpu.memory_space<vmem>>, %arg2: memref<128x52xf32, #tpu.memory_space<vmem>>, %arg3: memref<32x32xf32, #tpu.memory_space<vmem>>, %arg4: memref<1x32xf32, #tpu.memory_space<vmem>>, %arg5: memref<32x16xf32, #tpu.memory_space<vmem>>, %arg6: memref<1x16xf32, #tpu.memory_space<vmem>>, %arg7: memref<8x2xf32, #tpu.memory_space<vmem>>, %arg8: memref<4x2xf32, #tpu.memory_space<vmem>>, %arg9: memref<16x2xf32, #tpu.memory_space<vmem>>, %arg10: memref<1x2xf32, #tpu.memory_space<vmem>>, %arg11: memref<128x2xf32, #tpu.memory_space<vmem>>) attributes {dimension_semantics = [#tpu.dimension_semantics<parallel>], iteration_bounds = array<i64: 2>, scalar_prefetch = 0 : i64, scratch_operands = 0 : i64, tpu.core_type = #tpu.core_type<tc>, window_params = [{transform_indices = @transform_0, window_bounds = array<i64: 128, 4>}, {pipeline_mode = #tpu.pipeline_mode<synchronous>, transform_indices = @transform_1, window_bounds = array<i64: 128, 52>}, {pipeline_mode = #tpu.pipeline_mode<synchronous>, transform_indices = @transform_2, window_bounds = array<i64: 32, 32>}, {pipeline_mode = #tpu.pipeline_mode<synchronous>, transform_indices = @transform_3, window_bounds = array<i64: 1, 32>}, {pipeline_mode = #tpu.pipeline_mode<synchronous>, transform_indices = @transform_4, window_bounds = array<i64: 32, 16>}, {pipeline_mode = #tpu.pipeline_mode<synchronous>, transform_indices = @transform_5, window_bounds = array<i64: 1, 16>}, {pipeline_mode = #tpu.pipeline_mode<synchronous>, transform_indices = @transform_6, window_bounds = array<i64: 8, 2>}, {pipeline_mode = #tpu.pipeline_mode<synchronous>, transform_indices = @transform_7, window_bounds = array<i64: 4, 2>}, {pipeline_mode = #tpu.pipeline_mode<synchronous>, transform_indices = @transform_8, window_bounds = array<i64: 16, 2>}, {pipeline_mode = #tpu.pipeline_mode<synchronous>, transform_indices = @transform_9, window_bounds = array<i64: 1, 2>}, {transform_indices = @transform_10, window_bounds = array<i64: 128, 2>}]} {
    %c0 = arith.constant 0 : index
    %c0_0 = arith.constant 0 : index
    %0 = vector.load %arg1[%c0, %c0_0] : memref<128x4xi32, #tpu.memory_space<vmem>>, vector<128x4xi32>
    %1 = tpu.iota {dimensions = array<i32: 1>} : vector<128x128xi32>
    %cst = arith.constant 0.000000e+00 : f32
    %2 = vector.broadcast %cst : f32 to vector<128x128xf32>
    %3 = vector.extract_strided_slice %0 {offsets = [0, 0], sizes = [128, 1], strides = [1, 1]} : vector<128x4xi32> to vector<128x1xi32>
    %c0_i32 = arith.constant 0 : i32
    %4 = vector.broadcast %c0_i32 : i32 to vector<128x1xi32>
    %5 = arith.addi %3, %4 : vector<128x1xi32>
    %6 = vector.broadcast %5 : vector<128x1xi32> to vector<128x128xi32>
    %7 = arith.cmpi eq, %6, %1 : vector<128x128xi32>
    %8 = arith.extui %7 : vector<128x128xi1> to vector<128x128xi32>
    %9 = arith.sitofp %8 : vector<128x128xi32> to vector<128x128xf32>
    %10 = arith.addf %2, %9 : vector<128x128xf32>
    %11 = vector.extract_strided_slice %0 {offsets = [0, 1], sizes = [128, 1], strides = [1, 1]} : vector<128x4xi32> to vector<128x1xi32>
    %c32_i32 = arith.constant 32 : i32
    %12 = vector.broadcast %c32_i32 : i32 to vector<128x1xi32>
    %13 = arith.addi %11, %12 : vector<128x1xi32>
    %14 = vector.broadcast %13 : vector<128x1xi32> to vector<128x128xi32>
    %15 = arith.cmpi eq, %14, %1 : vector<128x128xi32>
    %16 = arith.extui %15 : vector<128x128xi1> to vector<128x128xi32>
    %17 = arith.sitofp %16 : vector<128x128xi32> to vector<128x128xf32>
    %18 = arith.addf %10, %17 : vector<128x128xf32>
    %19 = vector.extract_strided_slice %0 {offsets = [0, 2], sizes = [128, 1], strides = [1, 1]} : vector<128x4xi32> to vector<128x1xi32>
    %c64_i32 = arith.constant 64 : i32
    %20 = vector.broadcast %c64_i32 : i32 to vector<128x1xi32>
    %21 = arith.addi %19, %20 : vector<128x1xi32>
    %22 = vector.broadcast %21 : vector<128x1xi32> to vector<128x128xi32>
    %23 = arith.cmpi eq, %22, %1 : vector<128x128xi32>
    %24 = arith.extui %23 : vector<128x128xi1> to vector<128x128xi32>
    %25 = arith.sitofp %24 : vector<128x128xi32> to vector<128x128xf32>
    %26 = arith.addf %18, %25 : vector<128x128xf32>
    %27 = vector.extract_strided_slice %0 {offsets = [0, 3], sizes = [128, 1], strides = [1, 1]} : vector<128x4xi32> to vector<128x1xi32>
    %c96_i32 = arith.constant 96 : i32
    %28 = vector.broadcast %c96_i32 : i32 to vector<128x1xi32>
    %29 = arith.addi %27, %28 : vector<128x1xi32>
    %30 = vector.broadcast %29 : vector<128x1xi32> to vector<128x128xi32>
    %31 = arith.cmpi eq, %30, %1 : vector<128x128xi32>
    %32 = arith.extui %31 : vector<128x128xi1> to vector<128x128xi32>
    %33 = arith.sitofp %32 : vector<128x128xi32> to vector<128x128xf32>
    %34 = arith.addf %26, %33 : vector<128x128xf32>
    %c0_1 = arith.constant 0 : index
    %c0_2 = arith.constant 0 : index
    %35 = vector.load %arg2[%c0_1, %c0_2] : memref<128x52xf32, #tpu.memory_space<vmem>>, vector<128x52xf32>
    %cst_3 = arith.constant dense<0.000000e+00> : vector<128x52xf32>
    %36 = tpu.matmul %34, %35, %cst_3 {dimension_numbers = #tpu.dot_dimension_numbers<[1], [0], [0], [1], [0, 0, 1, 1], [], []>} : vector<128x128xf32>, vector<128x52xf32>, vector<128x52xf32> -> vector<128x52xf32>
    %37 = vector.extract_strided_slice %36 {offsets = [0, 0], sizes = [128, 32], strides = [1, 1]} : vector<128x52xf32> to vector<128x32xf32>
    %38 = vector.extract_strided_slice %36 {offsets = [0, 32], sizes = [128, 4], strides = [1, 1]} : vector<128x52xf32> to vector<128x4xf32>
    %39 = vector.extract_strided_slice %36 {offsets = [0, 36], sizes = [128, 8], strides = [1, 1]} : vector<128x52xf32> to vector<128x8xf32>
    %40 = vector.extract_strided_slice %36 {offsets = [0, 44], sizes = [128, 8], strides = [1, 1]} : vector<128x52xf32> to vector<128x8xf32>
    %41 = arith.mulf %39, %39 : vector<128x8xf32>
    %42 = arith.subf %41, %40 : vector<128x8xf32>
    %cst_4 = arith.constant 5.000000e-01 : f32
    %43 = vector.broadcast %cst_4 : f32 to vector<128x8xf32>
    %44 = arith.mulf %43, %42 : vector<128x8xf32>
    %c0_5 = arith.constant 0 : index
    %c0_6 = arith.constant 0 : index
    %45 = vector.load %arg3[%c0_5, %c0_6] : memref<32x32xf32, #tpu.memory_space<vmem>>, vector<32x32xf32>
    %cst_7 = arith.constant dense<0.000000e+00> : vector<128x32xf32>
    %46 = tpu.matmul %37, %45, %cst_7 {dimension_numbers = #tpu.dot_dimension_numbers<[1], [0], [0], [1], [0, 0, 1, 1], [], []>} : vector<128x32xf32>, vector<32x32xf32>, vector<128x32xf32> -> vector<128x32xf32>
    %c0_8 = arith.constant 0 : index
    %c0_9 = arith.constant 0 : index
    %47 = vector.load %arg4[%c0_8, %c0_9] : memref<1x32xf32, #tpu.memory_space<vmem>>, vector<1x32xf32>
    %48 = vector.broadcast %47 : vector<1x32xf32> to vector<128x32xf32>
    %49 = arith.addf %46, %48 : vector<128x32xf32>
    %cst_10 = arith.constant 0.000000e+00 : f32
    %50 = vector.broadcast %cst_10 : f32 to vector<128x32xf32>
    %51 = arith.maximumf %49, %50 : vector<128x32xf32>
    %c0_11 = arith.constant 0 : index
    %c0_12 = arith.constant 0 : index
    %52 = vector.load %arg5[%c0_11, %c0_12] : memref<32x16xf32, #tpu.memory_space<vmem>>, vector<32x16xf32>
    %cst_13 = arith.constant dense<0.000000e+00> : vector<128x16xf32>
    %53 = tpu.matmul %51, %52, %cst_13 {dimension_numbers = #tpu.dot_dimension_numbers<[1], [0], [0], [1], [0, 0, 1, 1], [], []>} : vector<128x32xf32>, vector<32x16xf32>, vector<128x16xf32> -> vector<128x16xf32>
    %c0_14 = arith.constant 0 : index
    %c0_15 = arith.constant 0 : index
    %54 = vector.load %arg6[%c0_14, %c0_15] : memref<1x16xf32, #tpu.memory_space<vmem>>, vector<1x16xf32>
    %55 = vector.broadcast %54 : vector<1x16xf32> to vector<128x16xf32>
    %56 = arith.addf %53, %55 : vector<128x16xf32>
    %cst_16 = arith.constant 0.000000e+00 : f32
    %57 = vector.broadcast %cst_16 : f32 to vector<128x16xf32>
    %58 = arith.maximumf %56, %57 : vector<128x16xf32>
    %c0_17 = arith.constant 0 : index
    %c0_18 = arith.constant 0 : index
    %59 = vector.load %arg7[%c0_17, %c0_18] : memref<8x2xf32, #tpu.memory_space<vmem>>, vector<8x2xf32>
    %cst_19 = arith.constant dense<0.000000e+00> : vector<128x2xf32>
    %60 = tpu.matmul %44, %59, %cst_19 {dimension_numbers = #tpu.dot_dimension_numbers<[1], [0], [0], [1], [0, 0, 1, 1], [], []>} : vector<128x8xf32>, vector<8x2xf32>, vector<128x2xf32> -> vector<128x2xf32>
    %c0_20 = arith.constant 0 : index
    %c0_21 = arith.constant 0 : index
    %61 = vector.load %arg8[%c0_20, %c0_21] : memref<4x2xf32, #tpu.memory_space<vmem>>, vector<4x2xf32>
    %cst_22 = arith.constant dense<0.000000e+00> : vector<128x2xf32>
    %62 = tpu.matmul %38, %61, %cst_22 {dimension_numbers = #tpu.dot_dimension_numbers<[1], [0], [0], [1], [0, 0, 1, 1], [], []>} : vector<128x4xf32>, vector<4x2xf32>, vector<128x2xf32> -> vector<128x2xf32>
    %63 = arith.addf %60, %62 : vector<128x2xf32>
    %c0_23 = arith.constant 0 : index
    %c0_24 = arith.constant 0 : index
    %64 = vector.load %arg9[%c0_23, %c0_24] : memref<16x2xf32, #tpu.memory_space<vmem>>, vector<16x2xf32>
    %cst_25 = arith.constant dense<0.000000e+00> : vector<128x2xf32>
    %65 = tpu.matmul %58, %64, %cst_25 {dimension_numbers = #tpu.dot_dimension_numbers<[1], [0], [0], [1], [0, 0, 1, 1], [], []>} : vector<128x16xf32>, vector<16x2xf32>, vector<128x2xf32> -> vector<128x2xf32>
    %66 = arith.addf %63, %65 : vector<128x2xf32>
    %c0_26 = arith.constant 0 : index
    %c0_27 = arith.constant 0 : index
    %67 = vector.load %arg10[%c0_26, %c0_27] : memref<1x2xf32, #tpu.memory_space<vmem>>, vector<1x2xf32>
    %68 = vector.broadcast %67 : vector<1x2xf32> to vector<128x2xf32>
    %69 = arith.addf %66, %68 : vector<128x2xf32>
    %70 = vector.extract_strided_slice %69 {offsets = [0, 0], sizes = [128, 1], strides = [1, 1]} : vector<128x2xf32> to vector<128x1xf32>
    %71 = vector.extract_strided_slice %69 {offsets = [0, 1], sizes = [128, 1], strides = [1, 1]} : vector<128x2xf32> to vector<128x1xf32>
    %72 = arith.maximumf %70, %71 : vector<128x1xf32>
    %73 = arith.subf %70, %72 : vector<128x1xf32>
    %74 = math.exp %73 : vector<128x1xf32>
    %75 = arith.subf %71, %72 : vector<128x1xf32>
    %76 = math.exp %75 : vector<128x1xf32>
    %77 = arith.addf %74, %76 : vector<128x1xf32>
    %78 = math.log %77 : vector<128x1xf32>
    %79 = arith.addf %72, %78 : vector<128x1xf32>
    %80 = vector.broadcast %79 : vector<128x1xf32> to vector<128x2xf32>
    %81 = arith.subf %69, %80 : vector<128x2xf32>
    %c0_28 = arith.constant 0 : index
    %c0_29 = arith.constant 0 : index
    %82 = vector.load %arg11[%c0_28, %c0_29] : memref<128x2xf32, #tpu.memory_space<vmem>>, vector<128x2xf32>
    tpu.vector_store %arg11[%c0_28, %c0_29], %81 {strides = array<i32>} : memref<128x2xf32, #tpu.memory_space<vmem>>, vector<128x2xf32>,
    return
  }
  func.func @transform_0(%arg0: i32) -> (i32, i32) {
    %c0_i32 = arith.constant 0 : i32
    %c0_i32_0 = arith.constant 0 : i32
    return %arg0, %c0_i32 : i32, i32
  }
  func.func @transform_1(%arg0: i32) -> (i32, i32) {
    %c0_i32 = arith.constant 0 : i32
    %c0_i32_0 = arith.constant 0 : i32
    %c0_i32_1 = arith.constant 0 : i32
    return %c0_i32, %c0_i32_0 : i32, i32
  }
  func.func @transform_2(%arg0: i32) -> (i32, i32) {
    %c0_i32 = arith.constant 0 : i32
    %c0_i32_0 = arith.constant 0 : i32
    %c0_i32_1 = arith.constant 0 : i32
    return %c0_i32, %c0_i32_0 : i32, i32
  }
  func.func @transform_3(%arg0: i32) -> (i32, i32) {
    %c0_i32 = arith.constant 0 : i32
    %c0_i32_0 = arith.constant 0 : i32
    %c0_i32_1 = arith.constant 0 : i32
    return %c0_i32, %c0_i32_0 : i32, i32
  }
  func.func @transform_4(%arg0: i32) -> (i32, i32) {
    %c0_i32 = arith.constant 0 : i32
    %c0_i32_0 = arith.constant 0 : i32
    %c0_i32_1 = arith.constant 0 : i32
    return %c0_i32, %c0_i32_0 : i32, i32
  }
  func.func @transform_5(%arg0: i32) -> (i32, i32) {
    %c0_i32 = arith.constant 0 : i32
    %c0_i32_0 = arith.constant 0 : i32
    %c0_i32_1 = arith.constant 0 : i32
    return %c0_i32, %c0_i32_0 : i32, i32
  }
  func.func @transform_6(%arg0: i32) -> (i32, i32) {
    %c0_i32 = arith.constant 0 : i32
    %c0_i32_0 = arith.constant 0 : i32
    %c0_i32_1 = arith.constant 0 : i32
    return %c0_i32, %c0_i32_0 : i32, i32
  }
  func.func @transform_7(%arg0: i32) -> (i32, i32) {
    %c0_i32 = arith.constant 0 : i32
    %c0_i32_0 = arith.constant 0 : i32
    %c0_i32_1 = arith.constant 0 : i32
    return %c0_i32, %c0_i32_0 : i32, i32
  }
  func.func @transform_8(%arg0: i32) -> (i32, i32) {
    %c0_i32 = arith.constant 0 : i32
    %c0_i32_0 = arith.constant 0 : i32
    %c0_i32_1 = arith.constant 0 : i32
    return %c0_i32, %c0_i32_0 : i32, i32
  }
  func.func @transform_9(%arg0: i32) -> (i32, i32) {
    %c0_i32 = arith.constant 0 : i32
    %c0_i32_0 = arith.constant 0 : i32
    %c0_i32_1 = arith.constant 0 : i32
    return %c0_i32, %c0_i32_0 : i32, i32
  }
  func.func @transform_10(%arg0: i32) -> (i32, i32) {
    %c0_i32 = arith.constant 0 : i32
    %c0_i32_0 = arith.constant 0 : i32
    return %arg0, %c0_i32 : i32, i32
  }
}

</mosaic_0001>

<llo_original>
// kernel: mul.29
$region0: #{mul.29}
  #allocation0 [shape = 's32[1]{0}', space=sflag, size = 0x4, scoped, tag = 'scoped memory for mul.29']
  %s0 = inlined_call_operand.vmem [shape: f32[32,8], index: 0, kind: input, shape index: {}, may-alias: {0,1}]
  %s1 = inlined_call_operand.vmem [shape: f32[32,8], index: 1, kind: input, shape index: {}, may-alias: {0,1}]
  %s2 = inlined_call_operand.vmem [shape: f32[32,8], index: 2, kind: output, shape index: {}]
  %v3 = vld [vmem:[%s0] sm:$0xff]
  %v4 = vld [vmem:[%s1] sm:$0xff]
  %5 = xla_tuple %v3, %v4
  %6 = xla_tuple %5
  %v7 = vmul.f32 %v3, %v4
  %8 = xla_tuple %v7
  %9 = vst [vmem:[%s2] sm:$0xff] %v7

// kernel: tile.19
$region0: #{tile.19}
  %s0 = inlined_call_operand.vmem [shape: f32[4,32,8], index: 0, kind: input, shape index: {}]
  %s1 = inlined_call_operand.vmem [shape: f32[128,8], index: 1, kind: output, shape index: {}]
  $region1: #{tile.19} parent=0
    #allocation0 [shape = 'u8[32768]{0}', space=vmem, size = 0x8000, scoped, tag = 'scoped mem for input reshape']
    %s3 = sshllo.u32 0, 4
    %s4 = smul.addr 4, 7
    %s5 = scalar_lea.vmem %s0, %s4
    %v6 = vld [vmem:[%s5] sm:%s3]
    %s7 = scalar_lea.vmem [#allocation0], 56
    %8 = vst [vmem:[%s7] sm:%s3] %v6
    %s9 = smul.addr 4, 6
    %s10 = scalar_lea.vmem %s0, %s9
    %v11 = vld [vmem:[%s10] sm:%s3]
    %s12 = scalar_lea.vmem [#allocation0], 48
    %13 = vst [vmem:[%s12] sm:%s3] %v11
    %s14 = smul.addr 4, 5
    %s15 = scalar_lea.vmem %s0, %s14
    %v16 = vld [vmem:[%s15] sm:%s3]
    %s17 = scalar_lea.vmem [#allocation0], 40
    %18 = vst [vmem:[%s17] sm:%s3] %v16
    %s19 = smul.addr 4, 4
    %s20 = scalar_lea.vmem %s0, %s19
    %v21 = vld [vmem:[%s20] sm:%s3]
    %s22 = scalar_lea.vmem [#allocation0], 32
    %23 = vst [vmem:[%s22] sm:%s3] %v21
    %s24 = smul.addr 4, 3
    %s25 = scalar_lea.vmem %s0, %s24
    %v26 = vld [vmem:[%s25] sm:%s3]
    %s27 = scalar_lea.vmem [#allocation0], 24
    %28 = vst [vmem:[%s27] sm:%s3] %v26
    %s29 = smul.addr 4, 2
    %s30 = scalar_lea.vmem %s0, %s29
    %v31 = vld [vmem:[%s30] sm:%s3]
    %s32 = scalar_lea.vmem [#allocation0], 16
    %33 = vst [vmem:[%s32] sm:%s3] %v31
    %s34 = scalar_lea.vmem %s0, 4
    %v35 = vld [vmem:[%s34] sm:%s3]
    %s36 = scalar_lea.vmem [#allocation0], 8
    %37 = vst [vmem:[%s36] sm:%s3] %v35
    %v38 = vld [vmem:[%s0] sm:%s3]
    %39 = vst [vmem:[#allocation0] sm:%s3] %v38
    %v40 = vld [vmem:[#allocation0] ss:$8 sm:$0xf]
    %v41 = vld [vmem:[#allocation0] ss:$8 sm:$0xf0]
    %vm42 = vcmask 1047556
    %v43 = vsel %vm42, %v41, %v40
    %vm44 = vcmask 261120
    %45 = vst.msk [vmem:[%s1] sm:$0xff] %vm44, %v43
    %s46 = scalar_lea.vmem [#allocation0], 3
    %v47 = vld [vmem:[%s46] ss:$8 sm:$0xf]
    %s48 = scalar_lea.vmem [#allocation0], 3
    %v49 = vld [vmem:[%s48] ss:$8 sm:$0xf0]
    %vm50 = vcmask 1047556
    %v51 = vsel %vm50, %v49, %v47
    %52 = vrot.lane.b32.xlu0 %v51, 96
    %v53 = vpop.permute.xlu0 %52
    %vm54 = vcmask 1048320
    %55 = vst.msk [vmem:[%s1] sm:$0xff] %vm54, %v53
    %s56 = scalar_lea.vmem [#allocation0], 2
    %v57 = vld [vmem:[%s56] ss:$8 sm:$0xf]
    %s58 = scalar_lea.vmem [#allocation0], 2
    %v59 = vld [vmem:[%s58] ss:$8 sm:$0xf0]
    %vm60 = vcmask 1047556
    %v61 = vsel %vm60, %v59, %v57
    %62 = vrot.lane.b32.xlu0 %v61, 64
    %v63 = vpop.permute.xlu0 %62
    %vm64 = vcmask 785920
    %65 = vst.msk [vmem:[%s1] sm:$0xff] %vm64, %v63
    %s66 = scalar_lea.vmem [#allocation0], 1
    %v67 = vld [vmem:[%s66] ss:$8 sm:$0xf]
    %s68 = scalar_lea.vmem [#allocation0], 1
    %v69 = vld [vmem:[%s68] ss:$8 sm:$0xf0]
    %vm70 = vcmask 1047556
    %v71 = vsel %vm70, %v69, %v67
    %72 = vrot.lane.b32.xlu0 %v71, 32
    %v73 = vpop.permute.xlu0 %72
    %vm74 = vcmask 523520
    %75 = vst.msk [vmem:[%s1] sm:$0xff] %vm74, %v73

// kernel: deepfm_forward.1
$region0: #{deepfm_forward.1}
  #allocation0 [shape = 'u32[]', space=smem, size = 0x4, offset = 0x4, fixed_abs, tag = 'smem constant byte address 0x4 - core index']
  #allocation1 [shape = 'u32[144,128]{1,0:T(1,128)}', space=vmem, size = 0x12000, scoped, tag = 'internal scratch']
  %s0 = inlined_call_operand.vmem [shape: s32[256,4], index: 0, kind: input, shape index: {}]
  %s1 = inlined_call_operand.vmem [shape: f32[128,52], index: 1, kind: input, shape index: {}]
  %s2 = inlined_call_operand.vmem [shape: f32[32,32], index: 2, kind: input, shape index: {}]
  %s3 = inlined_call_operand.vmem [shape: f32[1,32], index: 3, kind: input, shape index: {}]
  %s4 = inlined_call_operand.vmem [shape: f32[32,16], index: 4, kind: input, shape index: {}]
  %s5 = inlined_call_operand.vmem [shape: f32[1,16], index: 5, kind: input, shape index: {}]
  %s6 = inlined_call_operand.vmem [shape: f32[8,2], index: 6, kind: input, shape index: {}]
  %s7 = inlined_call_operand.vmem [shape: f32[4,2], index: 7, kind: input, shape index: {}]
  %s8 = inlined_call_operand.vmem [shape: f32[16,2], index: 8, kind: input, shape index: {}]
  %s9 = inlined_call_operand.vmem [shape: f32[1,2], index: 9, kind: input, shape index: {}]
  %s10 = inlined_call_operand.vmem [shape: f32[256,2], index: 10, kind: output, shape index: {}]
  %s11 = sld [smem:[#allocation0]]
  $region73: #{deepfm_forward.1} parent=0
    _
  %s13 = ssub.s32 1, %s11
  %s14 = scalar_select 0, %s13, %s11
  loop: start=0, step=1, limit=4
  $region2: #{deepfm_forward.1} parent=0 // loop_pre_header
    _
  $region3: #{deepfm_forward.1} parent=0 // loop_header
    %s16 = sphi 0, %s20
    %p17 = scmp.ge.s32.totalorder %s16, 4
    %s26 = sphi 0, %s28
    %s29 = sphi 0, %s26
    %s30 = sphi 0, %s29
    %s46 = sphi 0, %s30
    %s50 = sphi 0, %s50
    %s52 = sphi 0, %s50
    %s53 = sphi 0, %s52
    %s67 = sphi 0, %s53
    %s71 = sphi 0, %s71
    %s73 = sphi 0, %s71
    %s74 = sphi 0, %s73
    %s88 = sphi 0, %s74
    %s92 = sphi 0, %s92
    %s94 = sphi 0, %s92
    %s95 = sphi 0, %s94
    %s109 = sphi 0, %s95
    %s113 = sphi 0, %s113
    %s115 = sphi 0, %s113
    %s116 = sphi 0, %s115
    %s130 = sphi 0, %s116
    %s134 = sphi 0, %s134
    %s136 = sphi 0, %s134
    %s137 = sphi 0, %s136
    %s151 = sphi 0, %s137
    %s155 = sphi 0, %s155
    %s157 = sphi 0, %s155
    %s158 = sphi 0, %s157
    %s172 = sphi 0, %s158
    %s176 = sphi 0, %s176
    %s178 = sphi 0, %s176
    %s179 = sphi 0, %s178
    %s193 = sphi 0, %s179
    %s197 = sphi 0, %s197
    %s199 = sphi 0, %s197
    %s200 = sphi 0, %s199
    %s214 = sphi 0, %s200
    %s218 = sphi 0, %s218
    %s220 = sphi 0, %s218
    %s221 = sphi 0, %s220
    %s235 = sphi 0, %s221
    %s241 = sphi 0, %s243
    %s244 = sphi 0, %s241
    %s245 = sphi 0, %s244
    %s261 = sphi 0, %s245
  $region4: #{deepfm_forward.1} parent=0 // loop_header_branch
    %19 = sbr.rel (%p17) target = $region8
  $region5: #{deepfm_forward.1} parent=0 // loop_body
    %s21 = ssub.s32 %s16, 1
    %s22 = ssub.s32 %s16, 2
    %s23 = sadd.s32 %s16, 1
    %s24 = ssub.s32 %s16, %s23
    %p25 = scmp.eq.s32.totalorder %s24, 0
    %s27 = sadd.s32 %s26, 1
    %s28 = scalar_select %p25, %s26, %s27
    %p31 = pneg %p25
    %p32 = scmp.eq.s32.totalorder %s16, 1
    %p33 = por %p31, %p32
    %p34 = scmp.ne.s32.totalorder %s26, %s29
    %p35 = scmp.eq.s32.totalorder %s16, 0
    %p36 = por %p34, %p35
    %p37 = scmp.ne.s32.totalorder %s26, %s29
    %p38 = scmp.eq.s32.totalorder %s21, 1
    %p39 = por %p37, %p38
    %p40 = scmp.ne.s32.totalorder %s29, %s30
    %p41 = scmp.eq.s32.totalorder %s21, 0
    %p42 = por %p40, %p41
    %p43 = scmp.ne.s32.totalorder %s29, %s30
    %p44 = scmp.eq.s32.totalorder %s22, 1
    %p45 = por %p43, %p44
    %p47 = scmp.ne.s32.totalorder %s30, %s46
    %p48 = scmp.eq.s32.totalorder %s22, 0
    %p49 = por %p47, %p48
    %s51 = sadd.s32 %s50, 1
    %p54 = scmp.eq.s32.totalorder %s16, 1
    %p55 = scmp.ne.s32.totalorder %s50, %s52
    %p56 = scmp.eq.s32.totalorder %s16, 0
    %p57 = por %p55, %p56
    %p58 = scmp.ne.s32.totalorder %s50, %s52
    %p59 = scmp.eq.s32.totalorder %s21, 1
    %p60 = por %p58, %p59
    %p61 = scmp.ne.s32.totalorder %s52, %s53
    %p62 = scmp.eq.s32.totalorder %s21, 0
    %p63 = por %p61, %p62
    %p64 = scmp.ne.s32.totalorder %s52, %s53
    %p65 = scmp.eq.s32.totalorder %s22, 1
    %p66 = por %p64, %p65
    %p68 = scmp.ne.s32.totalorder %s53, %s67
    %p69 = scmp.eq.s32.totalorder %s22, 0
    %p70 = por %p68, %p69
    %s72 = sadd.s32 %s71, 1
    %p75 = scmp.eq.s32.totalorder %s16, 1
    %p76 = scmp.ne.s32.totalorder %s71, %s73
    %p77 = scmp.eq.s32.totalorder %s16, 0
    %p78 = por %p76, %p77
    %p79 = scmp.ne.s32.totalorder %s71, %s73
    %p80 = scmp.eq.s32.totalorder %s21, 1
    %p81 = por %p79, %p80
    %p82 = scmp.ne.s32.totalorder %s73, %s74
    %p83 = scmp.eq.s32.totalorder %s21, 0
    %p84 = por %p82, %p83
    %p85 = scmp.ne.s32.totalorder %s73, %s74
    %p86 = scmp.eq.s32.totalorder %s22, 1
    %p87 = por %p85, %p86
    %p89 = scmp.ne.s32.totalorder %s74, %s88
    %p90 = scmp.eq.s32.totalorder %s22, 0
    %p91 = por %p89, %p90
    %s93 = sadd.s32 %s92, 1
    %p96 = scmp.eq.s32.totalorder %s16, 1
    %p97 = scmp.ne.s32.totalorder %s92, %s94
    %p98 = scmp.eq.s32.totalorder %s16, 0
    %p99 = por %p97, %p98
    %p100 = scmp.ne.s32.totalorder %s92, %s94
    %p101 = scmp.eq.s32.totalorder %s21, 1
    %p102 = por %p100, %p101
    %p103 = scmp.ne.s32.totalorder %s94, %s95
    %p104 = scmp.eq.s32.totalorder %s21, 0
    %p105 = por %p103, %p104
    %p106 = scmp.ne.s32.totalorder %s94, %s95
    %p107 = scmp.eq.s32.totalorder %s22, 1
    %p108 = por %p106, %p107
    %p110 = scmp.ne.s32.totalorder %s95, %s109
    %p111 = scmp.eq.s32.totalorder %s22, 0
    %p112 = por %p110, %p111
    %s114 = sadd.s32 %s113, 1
    %p117 = scmp.eq.s32.totalorder %s16, 1
    %p118 = scmp.ne.s32.totalorder %s113, %s115
    %p119 = scmp.eq.s32.totalorder %s16, 0
    %p120 = por %p118, %p119
    %p121 = scmp.ne.s32.totalorder %s113, %s115
    %p122 = scmp.eq.s32.totalorder %s21, 1
    %p123 = por %p121, %p122
    %p124 = scmp.ne.s32.totalorder %s115, %s116
    %p125 = scmp.eq.s32.totalorder %s21, 0
    %p126 = por %p124, %p125
    %p127 = scmp.ne.s32.totalorder %s115, %s116
    %p128 = scmp.eq.s32.totalorder %s22, 1
    %p129 = por %p127, %p128
    %p131 = scmp.ne.s32.totalorder %s116, %s130
    %p132 = scmp.eq.s32.totalorder %s22, 0
    %p133 = por %p131, %p132
    %s135 = sadd.s32 %s134, 1
    %p138 = scmp.eq.s32.totalorder %s16, 1
    %p139 = scmp.ne.s32.totalorder %s134, %s136
    %p140 = scmp.eq.s32.totalorder %s16, 0
    %p141 = por %p139, %p140
    %p142 = scmp.ne.s32.totalorder %s134, %s136
    %p143 = scmp.eq.s32.totalorder %s21, 1
    %p144 = por %p142, %p143
    %p145 = scmp.ne.s32.totalorder %s136, %s137
    %p146 = scmp.eq.s32.totalorder %s21, 0
    %p147 = por %p145, %p146
    %p148 = scmp.ne.s32.totalorder %s136, %s137
    %p149 = scmp.eq.s32.totalorder %s22, 1
    %p150 = por %p148, %p149
    %p152 = scmp.ne.s32.totalorder %s137, %s151
    %p153 = scmp.eq.s32.totalorder %s22, 0
    %p154 = por %p152, %p153
    %s156 = sadd.s32 %s155, 1
    %p159 = scmp.eq.s32.totalorder %s16, 1
    %p160 = scmp.ne.s32.totalorder %s155, %s157
    %p161 = scmp.eq.s32.totalorder %s16, 0
    %p162 = por %p160, %p161
    %p163 = scmp.ne.s32.totalorder %s155, %s157
    %p164 = scmp.eq.s32.totalorder %s21, 1
    %p165 = por %p163, %p164
    %p166 = scmp.ne.s32.totalorder %s157, %s158
    %p167 = scmp.eq.s32.totalorder %s21, 0
    %p168 = por %p166, %p167
    %p169 = scmp.ne.s32.totalorder %s157, %s158
    %p170 = scmp.eq.s32.totalorder %s22, 1
    %p171 = por %p169, %p170
    %p173 = scmp.ne.s32.totalorder %s158, %s172
    %p174 = scmp.eq.s32.totalorder %s22, 0
    %p175 = por %p173, %p174
    %s177 = sadd.s32 %s176, 1
    %p180 = scmp.eq.s32.totalorder %s16, 1
    %p181 = scmp.ne.s32.totalorder %s176, %s178
    %p182 = scmp.eq.s32.totalorder %s16, 0
    %p183 = por %p181, %p182
    %p184 = scmp.ne.s32.totalorder %s176, %s178
    %p185 = scmp.eq.s32.totalorder %s21, 1
    %p186 = por %p184, %p185
    %p187 = scmp.ne.s32.totalorder %s178, %s179
    %p188 = scmp.eq.s32.totalorder %s21, 0
    %p189 = por %p187, %p188
    %p190 = scmp.ne.s32.totalorder %s178, %s179
    %p191 = scmp.eq.s32.totalorder %s22, 1
    %p192 = por %p190, %p191
    %p194 = scmp.ne.s32.totalorder %s179, %s193
    %p195 = scmp.eq.s32.totalorder %s22, 0
    %p196 = por %p194, %p195
    %s198 = sadd.s32 %s197, 1
    %p201 = scmp.eq.s32.totalorder %s16, 1
    %p202 = scmp.ne.s32.totalorder %s197, %s199
    %p203 = scmp.eq.s32.totalorder %s16, 0
    %p204 = por %p202, %p203
    %p205 = scmp.ne.s32.totalorder %s197, %s199
    %p206 = scmp.eq.s32.totalorder %s21, 1
    %p207 = por %p205, %p206
    %p208 = scmp.ne.s32.totalorder %s199, %s200
    %p209 = scmp.eq.s32.totalorder %s21, 0
    %p210 = por %p208, %p209
    %p211 = scmp.ne.s32.totalorder %s199, %s200
    %p212 = scmp.eq.s32.totalorder %s22, 1
    %p213 = por %p211, %p212
    %p215 = scmp.ne.s32.totalorder %s200, %s214
    %p216 = scmp.eq.s32.totalorder %s22, 0
    %p217 = por %p215, %p216
    %s219 = sadd.s32 %s218, 1
    %p222 = scmp.eq.s32.totalorder %s16, 1
    %p223 = scmp.ne.s32.totalorder %s218, %s220
    %p224 = scmp.eq.s32.totalorder %s16, 0
    %p225 = por %p223, %p224
    %p226 = scmp.ne.s32.totalorder %s218, %s220
    %p227 = scmp.eq.s32.totalorder %s21, 1
    %p228 = por %p226, %p227
    %p229 = scmp.ne.s32.totalorder %s220, %s221
    %p230 = scmp.eq.s32.totalorder %s21, 0
    %p231 = por %p229, %p230
    %p232 = scmp.ne.s32.totalorder %s220, %s221
    %p233 = scmp.eq.s32.totalorder %s22, 1
    %p234 = por %p232, %p233
    %p236 = scmp.ne.s32.totalorder %s221, %s235
    %p237 = scmp.eq.s32.totalorder %s22, 0
    %p238 = por %p236, %p237
    %s239 = ssub.s32 %s16, %s23
    %p240 = scmp.eq.s32.totalorder %s239, 0
    %s242 = sadd.s32 %s241, 1
    %s243 = scalar_select %p240, %s241, %s242
    %p246 = pneg %p240
    %p247 = scmp.eq.s32.totalorder %s16, 1
    %p248 = por %p246, %p247
    %p249 = scmp.ne.s32.totalorder %s241, %s244
    %p250 = scmp.eq.s32.totalorder %s16, 0
    %p251 = por %p249, %p250
    %p252 = scmp.ne.s32.totalorder %s241, %s244
    %p253 = scmp.eq.s32.totalorder %s21, 1
    %p254 = por %p252, %p253
    %p255 = scmp.ne.s32.totalorder %s244, %s245
    %p256 = scmp.eq.s32.totalorder %s21, 0
    %p257 = por %p255, %p256
    %p258 = scmp.ne.s32.totalorder %s244, %s245
    %p259 = scmp.eq.s32.totalorder %s22, 1
    %p260 = por %p258, %p259
    %p262 = scmp.ne.s32.totalorder %s245, %s261
    %p263 = scmp.eq.s32.totalorder %s22, 0
    %p264 = por %p262, %p263
    %p265 = scmp.le.s32.totalorder 1, %s16
    %p266 = scmp.lt.s32.totalorder %s16, 3
    %p267 = pnand %p265, %p266
    %p268 = pneg %p267
    // Predicated region
    $region9: #{deepfm_forward.1} parent=5 // pred_check
      _
    $region10: #{deepfm_forward.1} parent=5 // pred_check_branch
      %270 = sbr.rel (%p267) target = $region12
    $region11: #{deepfm_forward.1} parent=5 // pred_region
      %s271 = ssub.s32 %s16, 1
      // Predicated region
      $region13: #{deepfm_forward.1} parent=11 // pred_check
        %p272 = pneg %p63
      $region14: #{deepfm_forward.1} parent=11 // pred_check_branch
        %274 = sbr.rel (%p272) target = $region16
      $region15: #{deepfm_forward.1} parent=11 // pred_region
        _
      $region16: #{deepfm_forward.1} parent=11 // pred_fallthru
        _
      // Predicated region
      $region17: #{deepfm_forward.1} parent=11 // pred_check
        %p275 = pneg %p84
      $region18: #{deepfm_forward.1} parent=11 // pred_check_branch
        %277 = sbr.rel (%p275) target = $region20
      $region19: #{deepfm_forward.1} parent=11 // pred_region
        _
      $region20: #{deepfm_forward.1} parent=11 // pred_fallthru
        _
      // Predicated region
      $region21: #{deepfm_forward.1} parent=11 // pred_check
        %p278 = pneg %p105
      $region22: #{deepfm_forward.1} parent=11 // pred_check_branch
        %280 = sbr.rel (%p278) target = $region24
      $region23: #{deepfm_forward.1} parent=11 // pred_region
        _
      $region24: #{deepfm_forward.1} parent=11 // pred_fallthru
        _
      // Predicated region
      $region25: #{deepfm_forward.1} parent=11 // pred_check
        %p281 = pneg %p126
      $region26: #{deepfm_forward.1} parent=11 // pred_check_branch
        %283 = sbr.rel (%p281) target = $region28
      $region27: #{deepfm_forward.1} parent=11 // pred_region
        _
      $region28: #{deepfm_forward.1} parent=11 // pred_fallthru
        _
      // Predicated region
      $region29: #{deepfm_forward.1} parent=11 // pred_check
        %p284 = pneg %p147
      $region30: #{deepfm_forward.1} parent=11 // pred_check_branch
        %286 = sbr.rel (%p284) target = $region32
      $region31: #{deepfm_forward.1} parent=11 // pred_region
        _
      $region32: #{deepfm_forward.1} parent=11 // pred_fallthru
        _
      // Predicated region
      $region33: #{deepfm_forward.1} parent=11 // pred_check
        %p287 = pneg %p168
      $region34: #{deepfm_forward.1} parent=11 // pred_check_branch
        %289 = sbr.rel (%p287) target = $region36
      $region35: #{deepfm_forward.1} parent=11 // pred_region
        _
      $region36: #{deepfm_forward.1} parent=11 // pred_fallthru
        _
      // Predicated region
      $region37: #{deepfm_forward.1} parent=11 // pred_check
        %p290 = pneg %p189
      $region38: #{deepfm_forward.1} parent=11 // pred_check_branch
        %292 = sbr.rel (%p290) target = $region40
      $region39: #{deepfm_forward.1} parent=11 // pred_region
        _
      $region40: #{deepfm_forward.1} parent=11 // pred_fallthru
        _
      // Predicated region
      $region41: #{deepfm_forward.1} parent=11 // pred_check
        %p293 = pneg %p210
      $region42: #{deepfm_forward.1} parent=11 // pred_check_branch
        %295 = sbr.rel (%p293) target = $region44
      $region43: #{deepfm_forward.1} parent=11 // pred_region
        _
      $region44: #{deepfm_forward.1} parent=11 // pred_fallthru
        _
      // Predicated region
      $region45: #{deepfm_forward.1} parent=11 // pred_check
        %p296 = pneg %p231
      $region46: #{deepfm_forward.1} parent=11 // pred_check_branch
        %298 = sbr.rel (%p296) target = $region48
      $region47: #{deepfm_forward.1} parent=11 // pred_region
        _
      $region48: #{deepfm_forward.1} parent=11 // pred_fallthru
        _
    $region12: #{deepfm_forward.1} parent=5 // pred_fallthru
      _
    %p299 = scmp.lt.s32.totalorder %s16, 2
    // Predicated region
    $region49: #{deepfm_forward.1} parent=5 // pred_check
      %p300 = pneg %p299
    $region50: #{deepfm_forward.1} parent=5 // pred_check_branch
      %302 = sbr.rel (%p300) target = $region52
    $region51: #{deepfm_forward.1} parent=5 // pred_region
      // Predicated region
      $region53: #{deepfm_forward.1} parent=51 // pred_check
        %p303 = pneg %p36
      $region54: #{deepfm_forward.1} parent=51 // pred_check_branch
        %305 = sbr.rel (%p303) target = $region56
      $region55: #{deepfm_forward.1} parent=51 // pred_region
        %s306 = smul.u32 16, %s16
        %p307 = scmp.lt.s32.totalorder %s306, 31
        %s308 = scalar_select %p307, %s306, 31
        %s309 = smul.addr %s308, 8
        %s310 = scalar_lea.vmem %s0, %s309
        %s311 = smul.u32 16, %s16
      $region56: #{deepfm_forward.1} parent=51 // pred_fallthru
        _
    $region52: #{deepfm_forward.1} parent=5 // pred_fallthru
      _
    %p312 = scmp.le.s32.totalorder 1, %s16
    %p313 = scmp.lt.s32.totalorder %s16, 3
    %p314 = pnand %p312, %p313
    %p315 = pneg %p314
    // Predicated region
    $region57: #{deepfm_forward.1} parent=5 // pred_check
      _
    $region58: #{deepfm_forward.1} parent=5 // pred_check_branch
      %317 = sbr.rel (%p314) target = $region60
    $region59: #{deepfm_forward.1} parent=5 // pred_region
      %s318 = ssub.s32 %s16, 1
      %s319 = smul.u32 16, %s21
      %p320 = scmp.lt.s32.totalorder %s319, 31
      %s321 = scalar_select %p320, %s319, 31
      %s322 = smul.addr %s321, 8
      %s323 = scalar_lea.vmem %s0, %s322
      %p324 = pneg %p42
      %p325 = pneg %p39
      %p326 = pneg %p63
      %p327 = pneg %p60
      %p328 = pneg %p84
      %p329 = pneg %p81
      %p330 = pneg %p105
      %p331 = pneg %p102
      %p332 = pneg %p126
      %p333 = pneg %p123
      %p334 = pneg %p147
      %p335 = pneg %p144
      %p336 = pneg %p168
      %p337 = pneg %p165
      %p338 = pneg %p189
      %p339 = pneg %p186
      %p340 = pneg %p210
      %p341 = pneg %p207
      %p342 = pneg %p231
      %p343 = pneg %p228
      %p344 = pneg %p257
      %p345 = pneg %p254
      %s346 = smul.u32 16, %s21
      %p347 = scmp.lt.s32.totalorder %s346, 31
      %s348 = scalar_select %p347, %s346, 31
      %s349 = smul.addr %s348, 8
      %s350 = scalar_lea.vmem %s10, %s349
      %s351 = smul.u32 16, %s21
      %p352 = scmp.lt.s32.totalorder %s351, 31
      %s353 = scalar_select %p352, %s351, 31
      %s354 = smul.addr %s353, 8
      %s355 = scalar_lea.vmem %s0, %s354
      %s356 = smul.u32 16, %s21
      %s357 = smul.u32 16, %s21
      %p358 = scmp.lt.s32.totalorder %s357, 31
      %s359 = scalar_select %p358, %s357, 31
      %s360 = smul.addr %s359, 8
      %s361 = scalar_lea.vmem %s10, %s360
      %s362 = smul.u32 16, %s21
      %v363 = vld [vmem:[%s355] sm:$0xff]
      %v364 = vld [vmem:[%s355 + $0x8] sm:$0xff]
      %v365 = vld [vmem:[%s355 + $0x10] sm:$0xff]
      %v366 = vld [vmem:[%s355 + $0x18] sm:$0xff]
      %v367 = vld [vmem:[%s355 + $0x20] sm:$0xff]
      %v368 = vld [vmem:[%s355 + $0x28] sm:$0xff]
      %v369 = vld [vmem:[%s355 + $0x30] sm:$0xff]
      %v370 = vld [vmem:[%s355 + $0x38] sm:$0xff]
      %v371 = vld [vmem:[%s355 + $0x40] sm:$0xff]
      %v372 = vld [vmem:[%s355 + $0x48] sm:$0xff]
      %v373 = vld [vmem:[%s355 + $0x50] sm:$0xff]
      %v374 = vld [vmem:[%s355 + $0x58] sm:$0xff]
      %v375 = vld [vmem:[%s355 + $0x60] sm:$0xff]
      %v376 = vld [vmem:[%s355 + $0x68] sm:$0xff]
      %v377 = vld [vmem:[%s355 + $0x70] sm:$0xff]
      %v378 = vld [vmem:[%s355 + $0x78] sm:$0xff]
      %v379 = vlaneseq
      %v380 = vand.u32 %v379, 127
      %381 = vset.pattern.permute.xlu0 0
      %382 = vperm.xlu0 %381, %v363
      %v383 = vpop.permute.xlu0 %382
      %384 = vset.pattern.permute.xlu0 0
      %385 = vperm.xlu0 %384, %v364
      %v386 = vpop.permute.xlu0 %385
      %387 = vset.pattern.permute.xlu0 0
      %388 = vperm.xlu0 %387, %v365
      %v389 = vpop.permute.xlu0 %388
      %390 = vset.pattern.permute.xlu0 0
      %391 = vperm.xlu0 %390, %v366
      %v392 = vpop.permute.xlu0 %391
      %393 = vset.pattern.permute.xlu0 0
      %394 = vperm.xlu0 %393, %v367
      %v395 = vpop.permute.xlu0 %394
      %396 = vset.pattern.permute.xlu0 0
      %397 = vperm.xlu0 %396, %v368
      %v398 = vpop.permute.xlu0 %397
      %399 = vset.pattern.permute.xlu0 0
      %400 = vperm.xlu0 %399, %v369
      %v401 = vpop.permute.xlu0 %400
      %402 = vset.pattern.permute.xlu0 0
      %403 = vperm.xlu0 %402, %v370
      %v404 = vpop.permute.xlu0 %403
      %405 = vset.pattern.permute.xlu0 0
      %406 = vperm.xlu0 %405, %v371
      %v407 = vpop.permute.xlu0 %406
      %408 = vset.pattern.permute.xlu0 0
      %409 = vperm.xlu0 %408, %v372
      %v410 = vpop.permute.xlu0 %409
      %411 = vset.pattern.permute.xlu0 0
      %412 = vperm.xlu0 %411, %v373
      %v413 = vpop.permute.xlu0 %412
      %414 = vset.pattern.permute.xlu0 0
      %415 = vperm.xlu0 %414, %v374
      %v416 = vpop.permute.xlu0 %415
      %417 = vset.pattern.permute.xlu0 0
      %418 = vperm.xlu0 %417, %v375
      %v419 = vpop.permute.xlu0 %418
      %420 = vset.pattern.permute.xlu0 0
      %421 = vperm.xlu0 %420, %v376
      %v422 = vpop.permute.xlu0 %421
      %423 = vset.pattern.permute.xlu0 0
      %424 = vperm.xlu0 %423, %v377
      %v425 = vpop.permute.xlu0 %424
      %426 = vset.pattern.permute.xlu0 0
      %427 = vperm.xlu0 %426, %v378
      %v428 = vpop.permute.xlu0 %427
      %vm429 = vcmp.eq.s32.totalorder %v383, %v380
      %vm430 = vcmp.eq.s32.totalorder %v386, %v380
      %vm431 = vcmp.eq.s32.totalorder %v389, %v380
      %vm432 = vcmp.eq.s32.totalorder %v392, %v380
      %vm433 = vcmp.eq.s32.totalorder %v395, %v380
      %vm434 = vcmp.eq.s32.totalorder %v398, %v380
      %vm435 = vcmp.eq.s32.totalorder %v401, %v380
      %vm436 = vcmp.eq.s32.totalorder %v404, %v380
      %vm437 = vcmp.eq.s32.totalorder %v407, %v380
      %vm438 = vcmp.eq.s32.totalorder %v410, %v380
      %vm439 = vcmp.eq.s32.totalorder %v413, %v380
      %vm440 = vcmp.eq.s32.totalorder %v416, %v380
      %vm441 = vcmp.eq.s32.totalorder %v419, %v380
      %vm442 = vcmp.eq.s32.totalorder %v422, %v380
      %vm443 = vcmp.eq.s32.totalorder %v425, %v380
      %vm444 = vcmp.eq.s32.totalorder %v428, %v380
      %v445 = vsel %vm429, 1, 0
      %v446 = vsel %vm430, 1, 0
      %v447 = vsel %vm431, 1, 0
      %v448 = vsel %vm432, 1, 0
      %v449 = vsel %vm433, 1, 0
      %v450 = vsel %vm434, 1, 0
      %v451 = vsel %vm435, 1, 0
      %v452 = vsel %vm436, 1, 0
      %v453 = vsel %vm437, 1, 0
      %v454 = vsel %vm438, 1, 0
      %v455 = vsel %vm439, 1, 0
      %v456 = vsel %vm440, 1, 0
      %v457 = vsel %vm441, 1, 0
      %v458 = vsel %vm442, 1, 0
      %v459 = vsel %vm443, 1, 0
      %v460 = vsel %vm444, 1, 0
      %v461 = vcvt.s32.f32 %v445
      %v462 = vcvt.s32.f32 %v446
      %v463 = vcvt.s32.f32 %v447
      %v464 = vcvt.s32.f32 %v448
      %v465 = vcvt.s32.f32 %v449
      %v466 = vcvt.s32.f32 %v450
      %v467 = vcvt.s32.f32 %v451
      %v468 = vcvt.s32.f32 %v452
      %v469 = vcvt.s32.f32 %v453
      %v470 = vcvt.s32.f32 %v454
      %v471 = vcvt.s32.f32 %v455
      %v472 = vcvt.s32.f32 %v456
      %v473 = vcvt.s32.f32 %v457
      %v474 = vcvt.s32.f32 %v458
      %v475 = vcvt.s32.f32 %v459
      %v476 = vcvt.s32.f32 %v460
      %v477 = vadd.f32 %v461, 0.0
      %v478 = vadd.f32 %v462, 0.0
      %v479 = vadd.f32 %v463, 0.0
      %v480 = vadd.f32 %v464, 0.0
      %v481 = vadd.f32 %v465, 0.0
      %v482 = vadd.f32 %v466, 0.0
      %v483 = vadd.f32 %v467, 0.0
      %v484 = vadd.f32 %v468, 0.0
      %v485 = vadd.f32 %v469, 0.0
      %v486 = vadd.f32 %v470, 0.0
      %v487 = vadd.f32 %v471, 0.0
      %v488 = vadd.f32 %v472, 0.0
      %v489 = vadd.f32 %v473, 0.0
      %v490 = vadd.f32 %v474, 0.0
      %v491 = vadd.f32 %v475, 0.0
      %v492 = vadd.f32 %v476, 0.0
      %v493 = vadd.s32 %v363, 32
      %v494 = vadd.s32 %v364, 32
      %v495 = vadd.s32 %v365, 32
      %v496 = vadd.s32 %v366, 32
      %v497 = vadd.s32 %v367, 32
      %v498 = vadd.s32 %v368, 32
      %v499 = vadd.s32 %v369, 32
      %v500 = vadd.s32 %v370, 32
      %v501 = vadd.s32 %v371, 32
      %v502 = vadd.s32 %v372, 32
      %v503 = vadd.s32 %v373, 32
      %v504 = vadd.s32 %v374, 32
      %v505 = vadd.s32 %v375, 32
      %v506 = vadd.s32 %v376, 32
      %v507 = vadd.s32 %v377, 32
      %v508 = vadd.s32 %v378, 32
      %509 = vset.pattern.permute.xlu0 1
      %510 = vperm.xlu0 %509, %v493
      %v511 = vpop.permute.xlu0 %510
      %512 = vset.pattern.permute.xlu0 1
      %513 = vperm.xlu0 %512, %v494
      %v514 = vpop.permute.xlu0 %513
      %515 = vset.pattern.permute.xlu0 1
      %516 = vperm.xlu0 %515, %v495
      %v517 = vpop.permute.xlu0 %516
      %518 = vset.pattern.permute.xlu0 1
      %519 = vperm.xlu0 %518, %v496
      %v520 = vpop.permute.xlu0 %519
      %521 = vset.pattern.permute.xlu0 1
      %522 = vperm.xlu0 %521, %v497
      %v523 = vpop.permute.xlu0 %522
      %524 = vset.pattern.permute.xlu0 1
      %525 = vperm.xlu0 %524, %v498
      %v526 = vpop.permute.xlu0 %525
      %527 = vset.pattern.permute.xlu0 1
      %528 = vperm.xlu0 %527, %v499
      %v529 = vpop.permute.xlu0 %528
      %530 = vset.pattern.permute.xlu0 1
      %531 = vperm.xlu0 %530, %v500
      %v532 = vpop.permute.xlu0 %531
      %533 = vset.pattern.permute.xlu0 1
      %534 = vperm.xlu0 %533, %v501
      %v535 = vpop.permute.xlu0 %534
      %536 = vset.pattern.permute.xlu0 1
      %537 = vperm.xlu0 %536, %v502
      %v538 = vpop.permute.xlu0 %537
      %539 = vset.pattern.permute.xlu0 1
      %540 = vperm.xlu0 %539, %v503
      %v541 = vpop.permute.xlu0 %540
      %542 = vset.pattern.permute.xlu0 1
      %543 = vperm.xlu0 %542, %v504
      %v544 = vpop.permute.xlu0 %543
      %545 = vset.pattern.permute.xlu0 1
      %546 = vperm.xlu0 %545, %v505
      %v547 = vpop.permute.xlu0 %546
      %548 = vset.pattern.permute.xlu0 1
      %549 = vperm.xlu0 %548, %v506
      %v550 = vpop.permute.xlu0 %549
      %551 = vset.pattern.permute.xlu0 1
      %552 = vperm.xlu0 %551, %v507
      %v553 = vpop.permute.xlu0 %552
      %554 = vset.pattern.permute.xlu0 1
      %555 = vperm.xlu0 %554, %v508
      %v556 = vpop.permute.xlu0 %555
      %vm557 = vcmp.eq.s32.totalorder %v511, %v380
      %vm558 = vcmp.eq.s32.totalorder %v514, %v380
      %vm559 = vcmp.eq.s32.totalorder %v517, %v380
      %vm560 = vcmp.eq.s32.totalorder %v520, %v380
      %vm561 = vcmp.eq.s32.totalorder %v523, %v380
      %vm562 = vcmp.eq.s32.totalorder %v526, %v380
      %vm563 = vcmp.eq.s32.totalorder %v529, %v380
      %vm564 = vcmp.eq.s32.totalorder %v532, %v380
      %vm565 = vcmp.eq.s32.totalorder %v535, %v380
      %vm566 = vcmp.eq.s32.totalorder %v538, %v380
      %vm567 = vcmp.eq.s32.totalorder %v541, %v380
      %vm568 = vcmp.eq.s32.totalorder %v544, %v380
      %vm569 = vcmp.eq.s32.totalorder %v547, %v380
      %vm570 = vcmp.eq.s32.totalorder %v550, %v380
      %vm571 = vcmp.eq.s32.totalorder %v553, %v380
      %vm572 = vcmp.eq.s32.totalorder %v556, %v380
      %v573 = vsel %vm557, 1, 0
      %v574 = vsel %vm558, 1, 0
      %v575 = vsel %vm559, 1, 0
      %v576 = vsel %vm560, 1, 0
      %v577 = vsel %vm561, 1, 0
      %v578 = vsel %vm562, 1, 0
      %v579 = vsel %vm563, 1, 0
      %v580 = vsel %vm564, 1, 0
      %v581 = vsel %vm565, 1, 0
      %v582 = vsel %vm566, 1, 0
      %v583 = vsel %vm567, 1, 0
      %v584 = vsel %vm568, 1, 0
      %v585 = vsel %vm569, 1, 0
      %v586 = vsel %vm570, 1, 0
      %v587 = vsel %vm571, 1, 0
      %v588 = vsel %vm572, 1, 0
      %v589 = vcvt.s32.f32 %v573
      %v590 = vcvt.s32.f32 %v574
      %v591 = vcvt.s32.f32 %v575
      %v592 = vcvt.s32.f32 %v576
      %v593 = vcvt.s32.f32 %v577
      %v594 = vcvt.s32.f32 %v578
      %v595 = vcvt.s32.f32 %v579
      %v596 = vcvt.s32.f32 %v580
      %v597 = vcvt.s32.f32 %v581
      %v598 = vcvt.s32.f32 %v582
      %v599 = vcvt.s32.f32 %v583
      %v600 = vcvt.s32.f32 %v584
      %v601 = vcvt.s32.f32 %v585
      %v602 = vcvt.s32.f32 %v586
      %v603 = vcvt.s32.f32 %v587
      %v604 = vcvt.s32.f32 %v588
      %v605 = vadd.f32 %v477, %v589
      %v606 = vadd.f32 %v478, %v590
      %v607 = vadd.f32 %v479, %v591
      %v608 = vadd.f32 %v480, %v592
      %v609 = vadd.f32 %v481, %v593
      %v610 = vadd.f32 %v482, %v594
      %v611 = vadd.f32 %v483, %v595
      %v612 = vadd.f32 %v484, %v596
      %v613 = vadd.f32 %v485, %v597
      %v614 = vadd.f32 %v486, %v598
      %v615 = vadd.f32 %v487, %v599
      %v616 = vadd.f32 %v488, %v600
      %v617 = vadd.f32 %v489, %v601
      %v618 = vadd.f32 %v490, %v602
      %v619 = vadd.f32 %v491, %v603
      %v620 = vadd.f32 %v492, %v604
      %v621 = vadd.s32 %v363, 64
      %v622 = vadd.s32 %v364, 64
      %v623 = vadd.s32 %v365, 64
      %v624 = vadd.s32 %v366, 64
      %v625 = vadd.s32 %v367, 64
      %v626 = vadd.s32 %v368, 64
      %v627 = vadd.s32 %v369, 64
      %v628 = vadd.s32 %v370, 64
      %v629 = vadd.s32 %v371, 64
      %v630 = vadd.s32 %v372, 64
      %v631 = vadd.s32 %v373, 64
      %v632 = vadd.s32 %v374, 64
      %v633 = vadd.s32 %v375, 64
      %v634 = vadd.s32 %v376, 64
      %v635 = vadd.s32 %v377, 64
      %v636 = vadd.s32 %v378, 64
      %637 = vset.pattern.permute.xlu0 2
      %638 = vperm.xlu0 %637, %v621
      %v639 = vpop.permute.xlu0 %638
      %640 = vset.pattern.permute.xlu0 2
      %641 = vperm.xlu0 %640, %v622
      %v642 = vpop.permute.xlu0 %641
      %643 = vset.pattern.permute.xlu0 2
      %644 = vperm.xlu0 %643, %v623
      %v645 = vpop.permute.xlu0 %644
      %646 = vset.pattern.permute.xlu0 2
      %647 = vperm.xlu0 %646, %v624
      %v648 = vpop.permute.xlu0 %647
      %649 = vset.pattern.permute.xlu0 2
      %650 = vperm.xlu0 %649, %v625
      %v651 = vpop.permute.xlu0 %650
      %652 = vset.pattern.permute.xlu0 2
      %653 = vperm.xlu0 %652, %v626
      %v654 = vpop.permute.xlu0 %653
      %655 = vset.pattern.permute.xlu0 2
      %656 = vperm.xlu0 %655, %v627
      %v657 = vpop.permute.xlu0 %656
      %658 = vset.pattern.permute.xlu0 2
      %659 = vperm.xlu0 %658, %v628
      %v660 = vpop.permute.xlu0 %659
      %661 = vset.pattern.permute.xlu0 2
      %662 = vperm.xlu0 %661, %v629
      %v663 = vpop.permute.xlu0 %662
      %664 = vset.pattern.permute.xlu0 2
      %665 = vperm.xlu0 %664, %v630
      %v666 = vpop.permute.xlu0 %665
      %667 = vset.pattern.permute.xlu0 2
      %668 = vperm.xlu0 %667, %v631
      %v669 = vpop.permute.xlu0 %668
      %670 = vset.pattern.permute.xlu0 2
      %671 = vperm.xlu0 %670, %v632
      %v672 = vpop.permute.xlu0 %671
      %673 = vset.pattern.permute.xlu0 2
      %674 = vperm.xlu0 %673, %v633
      %v675 = vpop.permute.xlu0 %674
      %676 = vset.pattern.permute.xlu0 2
      %677 = vperm.xlu0 %676, %v634
      %v678 = vpop.permute.xlu0 %677
      %679 = vset.pattern.permute.xlu0 2
      %680 = vperm.xlu0 %679, %v635
      %v681 = vpop.permute.xlu0 %680
      %682 = vset.pattern.permute.xlu0 2
      %683 = vperm.xlu0 %682, %v636
      %v684 = vpop.permute.xlu0 %683
      %vm685 = vcmp.eq.s32.totalorder %v639, %v380
      %vm686 = vcmp.eq.s32.totalorder %v642, %v380
      %vm687 = vcmp.eq.s32.totalorder %v645, %v380
      %vm688 = vcmp.eq.s32.totalorder %v648, %v380
      %vm689 = vcmp.eq.s32.totalorder %v651, %v380
      %vm690 = vcmp.eq.s32.totalorder %v654, %v380
      %vm691 = vcmp.eq.s32.totalorder %v657, %v380
      %vm692 = vcmp.eq.s32.totalorder %v660, %v380
      %vm693 = vcmp.eq.s32.totalorder %v663, %v380
      %vm694 = vcmp.eq.s32.totalorder %v666, %v380
      %vm695 = vcmp.eq.s32.totalorder %v669, %v380
      %vm696 = vcmp.eq.s32.totalorder %v672, %v380
      %vm697 = vcmp.eq.s32.totalorder %v675, %v380
      %vm698 = vcmp.eq.s32.totalorder %v678, %v380
      %vm699 = vcmp.eq.s32.totalorder %v681, %v380
      %vm700 = vcmp.eq.s32.totalorder %v684, %v380
      %v701 = vsel %vm685, 1, 0
      %v702 = vsel %vm686, 1, 0
      %v703 = vsel %vm687, 1, 0
      %v704 = vsel %vm688, 1, 0
      %v705 = vsel %vm689, 1, 0
      %v706 = vsel %vm690, 1, 0
      %v707 = vsel %vm691, 1, 0
      %v708 = vsel %vm692, 1, 0
      %v709 = vsel %vm693, 1, 0
      %v710 = vsel %vm694, 1, 0
      %v711 = vsel %vm695, 1, 0
      %v712 = vsel %vm696, 1, 0
      %v713 = vsel %vm697, 1, 0
      %v714 = vsel %vm698, 1, 0
      %v715 = vsel %vm699, 1, 0
      %v716 = vsel %vm700, 1, 0
      %v717 = vcvt.s32.f32 %v701
      %v718 = vcvt.s32.f32 %v702
      %v719 = vcvt.s32.f32 %v703
      %v720 = vcvt.s32.f32 %v704
      %v721 = vcvt.s32.f32 %v705
      %v722 = vcvt.s32.f32 %v706
      %v723 = vcvt.s32.f32 %v707
      %v724 = vcvt.s32.f32 %v708
      %v725 = vcvt.s32.f32 %v709
      %v726 = vcvt.s32.f32 %v710
      %v727 = vcvt.s32.f32 %v711
      %v728 = vcvt.s32.f32 %v712
      %v729 = vcvt.s32.f32 %v713
      %v730 = vcvt.s32.f32 %v714
      %v731 = vcvt.s32.f32 %v715
      %v732 = vcvt.s32.f32 %v716
      %v733 = vadd.f32 %v605, %v717
      %v734 = vadd.f32 %v606, %v718
      %v735 = vadd.f32 %v607, %v719
      %v736 = vadd.f32 %v608, %v720
      %v737 = vadd.f32 %v609, %v721
      %v738 = vadd.f32 %v610, %v722
      %v739 = vadd.f32 %v611, %v723
      %v740 = vadd.f32 %v612, %v724
      %v741 = vadd.f32 %v613, %v725
      %v742 = vadd.f32 %v614, %v726
      %v743 = vadd.f32 %v615, %v727
      %v744 = vadd.f32 %v616, %v728
      %v745 = vadd.f32 %v617, %v729
      %v746 = vadd.f32 %v618, %v730
      %v747 = vadd.f32 %v619, %v731
      %v748 = vadd.f32 %v620, %v732
      %v749 = vadd.s32 %v363, 96
      %v750 = vadd.s32 %v364, 96
      %v751 = vadd.s32 %v365, 96
      %v752 = vadd.s32 %v366, 96
      %v753 = vadd.s32 %v367, 96
      %v754 = vadd.s32 %v368, 96
      %v755 = vadd.s32 %v369, 96
      %v756 = vadd.s32 %v370, 96
      %v757 = vadd.s32 %v371, 96
      %v758 = vadd.s32 %v372, 96
      %v759 = vadd.s32 %v373, 96
      %v760 = vadd.s32 %v374, 96
      %v761 = vadd.s32 %v375, 96
      %v762 = vadd.s32 %v376, 96
      %v763 = vadd.s32 %v377, 96
      %v764 = vadd.s32 %v378, 96
      %765 = vset.pattern.permute.xlu0 3
      %766 = vperm.xlu0 %765, %v749
      %v767 = vpop.permute.xlu0 %766
      %768 = vset.pattern.permute.xlu0 3
      %769 = vperm.xlu0 %768, %v750
      %v770 = vpop.permute.xlu0 %769
      %771 = vset.pattern.permute.xlu0 3
      %772 = vperm.xlu0 %771, %v751
      %v773 = vpop.permute.xlu0 %772
      %774 = vset.pattern.permute.xlu0 3
      %775 = vperm.xlu0 %774, %v752
      %v776 = vpop.permute.xlu0 %775
      %777 = vset.pattern.permute.xlu0 3
      %778 = vperm.xlu0 %777, %v753
      %v779 = vpop.permute.xlu0 %778
      %780 = vset.pattern.permute.xlu0 3
      %781 = vperm.xlu0 %780, %v754
      %v782 = vpop.permute.xlu0 %781
      %783 = vset.pattern.permute.xlu0 3
      %784 = vperm.xlu0 %783, %v755
      %v785 = vpop.permute.xlu0 %784
      %786 = vset.pattern.permute.xlu0 3
      %787 = vperm.xlu0 %786, %v756
      %v788 = vpop.permute.xlu0 %787
      %789 = vset.pattern.permute.xlu0 3
      %790 = vperm.xlu0 %789, %v757
      %v791 = vpop.permute.xlu0 %790
      %792 = vset.pattern.permute.xlu0 3
      %793 = vperm.xlu0 %792, %v758
      %v794 = vpop.permute.xlu0 %793
      %795 = vset.pattern.permute.xlu0 3
      %796 = vperm.xlu0 %795, %v759
      %v797 = vpop.permute.xlu0 %796
      %798 = vset.pattern.permute.xlu0 3
      %799 = vperm.xlu0 %798, %v760
      %v800 = vpop.permute.xlu0 %799
      %801 = vset.pattern.permute.xlu0 3
      %802 = vperm.xlu0 %801, %v761
      %v803 = vpop.permute.xlu0 %802
      %804 = vset.pattern.permute.xlu0 3
      %805 = vperm.xlu0 %804, %v762
      %v806 = vpop.permute.xlu0 %805
      %807 = vset.pattern.permute.xlu0 3
      %808 = vperm.xlu0 %807, %v763
      %v809 = vpop.permute.xlu0 %808
      %810 = vset.pattern.permute.xlu0 3
      %811 = vperm.xlu0 %810, %v764
      %v812 = vpop.permute.xlu0 %811
      %vm813 = vcmp.eq.s32.totalorder %v767, %v380
      %vm814 = vcmp.eq.s32.totalorder %v770, %v380
      %vm815 = vcmp.eq.s32.totalorder %v773, %v380
      %vm816 = vcmp.eq.s32.totalorder %v776, %v380
      %vm817 = vcmp.eq.s32.totalorder %v779, %v380
      %vm818 = vcmp.eq.s32.totalorder %v782, %v380
      %vm819 = vcmp.eq.s32.totalorder %v785, %v380
      %vm820 = vcmp.eq.s32.totalorder %v788, %v380
      %vm821 = vcmp.eq.s32.totalorder %v791, %v380
      %vm822 = vcmp.eq.s32.totalorder %v794, %v380
      %vm823 = vcmp.eq.s32.totalorder %v797, %v380
      %vm824 = vcmp.eq.s32.totalorder %v800, %v380
      %vm825 = vcmp.eq.s32.totalorder %v803, %v380
      %vm826 = vcmp.eq.s32.totalorder %v806, %v380
      %vm827 = vcmp.eq.s32.totalorder %v809, %v380
      %vm828 = vcmp.eq.s32.totalorder %v812, %v380
      %v829 = vsel %vm813, 1, 0
      %v830 = vsel %vm814, 1, 0
      %v831 = vsel %vm815, 1, 0
      %v832 = vsel %vm816, 1, 0
      %v833 = vsel %vm817, 1, 0
      %v834 = vsel %vm818, 1, 0
      %v835 = vsel %vm819, 1, 0
      %v836 = vsel %vm820, 1, 0
      %v837 = vsel %vm821, 1, 0
      %v838 = vsel %vm822, 1, 0
      %v839 = vsel %vm823, 1, 0
      %v840 = vsel %vm824, 1, 0
      %v841 = vsel %vm825, 1, 0
      %v842 = vsel %vm826, 1, 0
      %v843 = vsel %vm827, 1, 0
      %v844 = vsel %vm828, 1, 0
      %v845 = vcvt.s32.f32 %v829
      %v846 = vcvt.s32.f32 %v830
      %v847 = vcvt.s32.f32 %v831
      %v848 = vcvt.s32.f32 %v832
      %v849 = vcvt.s32.f32 %v833
      %v850 = vcvt.s32.f32 %v834
      %v851 = vcvt.s32.f32 %v835
      %v852 = vcvt.s32.f32 %v836
      %v853 = vcvt.s32.f32 %v837
      %v854 = vcvt.s32.f32 %v838
      %v855 = vcvt.s32.f32 %v839
      %v856 = vcvt.s32.f32 %v840
      %v857 = vcvt.s32.f32 %v841
      %v858 = vcvt.s32.f32 %v842
      %v859 = vcvt.s32.f32 %v843
      %v860 = vcvt.s32.f32 %v844
      %v861 = vadd.f32 %v733, %v845
      %v862 = vadd.f32 %v734, %v846
      %v863 = vadd.f32 %v735, %v847
      %v864 = vadd.f32 %v736, %v848
      %v865 = vadd.f32 %v737, %v849
      %v866 = vadd.f32 %v738, %v850
      %v867 = vadd.f32 %v739, %v851
      %v868 = vadd.f32 %v740, %v852
      %v869 = vadd.f32 %v741, %v853
      %v870 = vadd.f32 %v742, %v854
      %v871 = vadd.f32 %v743, %v855
      %v872 = vadd.f32 %v744, %v856
      %v873 = vadd.f32 %v745, %v857
      %v874 = vadd.f32 %v746, %v858
      %v875 = vadd.f32 %v747, %v859
      %v876 = vadd.f32 %v748, %v860
      %v877 = vld [vmem:[%s1] sm:$0xff]
      %v878 = vld [vmem:[%s1 + $0x8] sm:$0xff]
      %v879 = vld [vmem:[%s1 + $0x10] sm:$0xff]
      %v880 = vld [vmem:[%s1 + $0x18] sm:$0xff]
      %v881 = vld [vmem:[%s1 + $0x20] sm:$0xff]
      %v882 = vld [vmem:[%s1 + $0x28] sm:$0xff]
      %v883 = vld [vmem:[%s1 + $0x30] sm:$0xff]
      %v884 = vld [vmem:[%s1 + $0x38] sm:$0xff]
      %v885 = vld [vmem:[%s1 + $0x40] sm:$0xff]
      %v886 = vld [vmem:[%s1 + $0x48] sm:$0xff]
      %v887 = vld [vmem:[%s1 + $0x50] sm:$0xff]
      %v888 = vld [vmem:[%s1 + $0x58] sm:$0xff]
      %v889 = vld [vmem:[%s1 + $0x60] sm:$0xff]
      %v890 = vld [vmem:[%s1 + $0x68] sm:$0xff]
      %v891 = vld [vmem:[%s1 + $0x70] sm:$0xff]
      %v892 = vld [vmem:[%s1 + $0x78] sm:$0xff]
      %893 = vmatprep.subr.mxu0 0.0
      %894 = vmatpush1.msra.mxu0 %v877
      %895 = vmatprep.subr.mxu0 0.0
      %896 = vmatpush1.msra.mxu0 %v878
      %897 = vmatprep.subr.mxu0 0.0
      %898 = vmatpush1.msra.mxu0 %v879
      %899 = vmatprep.subr.mxu0 0.0
      %900 = vmatpush1.msra.mxu0 %v880
      %901 = vmatprep.subr.mxu0 0.0
      %902 = vmatpush1.msra.mxu0 %v881
      %903 = vmatprep.subr.mxu0 0.0
      %904 = vmatpush1.msra.mxu0 %v882
      %905 = vmatprep.subr.mxu0 0.0
      %906 = vmatpush1.msra.mxu0 %v883
      %907 = vmatprep.subr.mxu0 0.0
      %908 = vmatpush1.msra.mxu0 %v884
      %909 = vmatprep.subr.mxu0 0.0
      %910 = vmatpush1.msra.mxu0 %v885
      %911 = vmatprep.subr.mxu0 0.0
      %912 = vmatpush1.msra.mxu0 %v886
      %913 = vmatprep.subr.mxu0 0.0
      %914 = vmatpush1.msra.mxu0 %v887
      %915 = vmatprep.subr.mxu0 0.0
      %916 = vmatpush1.msra.mxu0 %v888
      %917 = vmatprep.subr.mxu0 0.0
      %918 = vmatpush1.msra.mxu0 %v889
      %919 = vmatprep.subr.mxu0 0.0
      %920 = vmatpush1.msra.mxu0 %v890
      %921 = vmatprep.subr.mxu0 0.0
      %922 = vmatpush1.msra.mxu0 %v891
      %923 = vmatprep.subr.mxu0 0.0
      %924 = vmatpush1.msra.mxu0 %v892
      %925 = vmatprep.subr.mxu0 0.0
      %926 = vmatpush1.msra.mxu0 0.0
      %927 = vmatprep.subr.mxu0 0.0
      %928 = vmatpush1.msra.mxu0 0.0
      %929 = vmatprep.subr.mxu0 0.0
      %930 = vmatpush1.msra.mxu0 0.0
      %931 = vmatprep.subr.mxu0 0.0
      %932 = vmatpush1.msra.mxu0 0.0
      %933 = vmatprep.subr.mxu0 0.0
      %934 = vmatpush1.msra.mxu0 0.0
      %935 = vmatprep.subr.mxu0 0.0
      %936 = vmatpush1.msra.mxu0 0.0
      %937 = vmatprep.subr.mxu0 0.0
      %938 = vmatpush1.msra.mxu0 0.0
      %939 = vmatprep.subr.mxu0 0.0
      %940 = vmatpush1.msra.mxu0 0.0
      %941 = vmatprep.subr.mxu0 0.0
      %942 = vmatpush1.msra.mxu0 0.0
      %943 = vmatprep.subr.mxu0 0.0
      %944 = vmatpush1.msra.mxu0 0.0
      %945 = vmatprep.subr.mxu0 0.0
      %946 = vmatpush1.msra.mxu0 0.0
      %947 = vmatprep.subr.mxu0 0.0
      %948 = vmatpush1.msra.mxu0 0.0
      %949 = vmatprep.subr.mxu0 0.0
      %950 = vmatpush1.msra.mxu0 0.0
      %951 = vmatprep.subr.mxu0 0.0
      %952 = vmatpush1.msra.mxu0 0.0
      %953 = vmatprep.subr.mxu0 0.0
      %954 = vmatpush1.msra.mxu0 0.0
      %955 = vmatprep.subr.mxu0 0.0
      %956 = vmatpush1.msra.mxu0 0.0
      %957 = vmatprep.mubr.f32.mxu0 0.0
      %958 = vmatmul.mubr.f32.gmra.mrb[0].mxu0 %v861
      %v959 = vpop.f32.mrb[0].mxu0
      %v960 = vadd.f32 0.0, %v959
      %v961 = vpop.f32.mrb[0].mxu0
      %962 = vmatprep.mubr.f32.mxu0 0.0
      %963 = vmatmul.mubr.f32.gmra.mrb[0].mxu0 %v862
      %v964 = vpop.f32.mrb[0].mxu0
      %v965 = vadd.f32 0.0, %v964
      %v966 = vpop.f32.mrb[0].mxu0
      %967 = vmatprep.mubr.f32.mxu0 0.0
      %968 = vmatmul.mubr.f32.gmra.mrb[0].mxu0 %v863
      %v969 = vpop.f32.mrb[0].mxu0
      %v970 = vadd.f32 0.0, %v969
      %v971 = vpop.f32.mrb[0].mxu0
      %972 = vmatprep.mubr.f32.mxu0 0.0
      %973 = vmatmul.mubr.f32.gmra.mrb[0].mxu0 %v864
      %v974 = vpop.f32.mrb[0].mxu0
      %v975 = vadd.f32 0.0, %v974
      %v976 = vpop.f32.mrb[0].mxu0
      %977 = vmatprep.mubr.f32.mxu0 0.0
      %978 = vmatmul.mubr.f32.gmra.mrb[0].mxu0 %v865
      %v979 = vpop.f32.mrb[0].mxu0
      %v980 = vadd.f32 0.0, %v979
      %v981 = vpop.f32.mrb[0].mxu0
      %982 = vmatprep.mubr.f32.mxu0 0.0
      %983 = vmatmul.mubr.f32.gmra.mrb[0].mxu0 %v866
      %v984 = vpop.f32.mrb[0].mxu0
      %v985 = vadd.f32 0.0, %v984
      %v986 = vpop.f32.mrb[0].mxu0
      %987 = vmatprep.mubr.f32.mxu0 0.0
      %988 = vmatmul.mubr.f32.gmra.mrb[0].mxu0 %v867
      %v989 = vpop.f32.mrb[0].mxu0
      %v990 = vadd.f32 0.0, %v989
      %v991 = vpop.f32.mrb[0].mxu0
      %992 = vmatprep.mubr.f32.mxu0 0.0
      %993 = vmatmul.mubr.f32.gmra.mrb[0].mxu0 %v868
      %v994 = vpop.f32.mrb[0].mxu0
      %v995 = vadd.f32 0.0, %v994
      %v996 = vpop.f32.mrb[0].mxu0
      %997 = vmatprep.mubr.f32.mxu0 0.0
      %998 = vmatmul.mubr.f32.gmra.mrb[0].mxu0 %v869
      %v999 = vpop.f32.mrb[0].mxu0
      %v1000 = vadd.f32 0.0, %v999
      %v1001 = vpop.f32.mrb[0].mxu0
      %1002 = vmatprep.mubr.f32.mxu0 0.0
      %1003 = vmatmul.mubr.f32.gmra.mrb[0].mxu0 %v870
      %v1004 = vpop.f32.mrb[0].mxu0
      %v1005 = vadd.f32 0.0, %v1004
      %v1006 = vpop.f32.mrb[0].mxu0
      %1007 = vmatprep.mubr.f32.mxu0 0.0
      %1008 = vmatmul.mubr.f32.gmra.mrb[0].mxu0 %v871
      %v1009 = vpop.f32.mrb[0].mxu0
      %v1010 = vadd.f32 0.0, %v1009
      %v1011 = vpop.f32.mrb[0].mxu0
      %1012 = vmatprep.mubr.f32.mxu0 0.0
      %1013 = vmatmul.mubr.f32.gmra.mrb[0].mxu0 %v872
      %v1014 = vpop.f32.mrb[0].mxu0
      %v1015 = vadd.f32 0.0, %v1014
      %v1016 = vpop.f32.mrb[0].mxu0
      %1017 = vmatprep.mubr.f32.mxu0 0.0
      %1018 = vmatmul.mubr.f32.gmra.mrb[0].mxu0 %v873
      %v1019 = vpop.f32.mrb[0].mxu0
      %v1020 = vadd.f32 0.0, %v1019
      %v1021 = vpop.f32.mrb[0].mxu0
      %1022 = vmatprep.mubr.f32.mxu0 0.0
      %1023 = vmatmul.mubr.f32.gmra.mrb[0].mxu0 %v874
      %v1024 = vpop.f32.mrb[0].mxu0
      %v1025 = vadd.f32 0.0, %v1024
      %v1026 = vpop.f32.mrb[0].mxu0
      %1027 = vmatprep.mubr.f32.mxu0 0.0
      %1028 = vmatmul.mubr.f32.gmra.mrb[0].mxu0 %v875
      %v1029 = vpop.f32.mrb[0].mxu0
      %v1030 = vadd.f32 0.0, %v1029
      %v1031 = vpop.f32.mrb[0].mxu0
      %1032 = vmatprep.mubr.f32.mxu0 0.0
      %1033 = vmatmul.mubr.f32.gmra.mrb[0].mxu0 %v876
      %v1034 = vpop.f32.mrb[0].mxu0
      %v1035 = vadd.f32 0.0, %v1034
      %v1036 = vpop.f32.mrb[0].mxu0
      %1037 = vdwg.mxu0
      %v1038 = vmul.f32 %v960, %v960
      %v1039 = vmul.f32 %v965, %v965
      %v1040 = vmul.f32 %v970, %v970
      %v1041 = vmul.f32 %v975, %v975
      %v1042 = vmul.f32 %v980, %v980
      %v1043 = vmul.f32 %v985, %v985
      %v1044 = vmul.f32 %v990, %v990
      %v1045 = vmul.f32 %v995, %v995
      %v1046 = vmul.f32 %v1000, %v1000
      %v1047 = vmul.f32 %v1005, %v1005
      %v1048 = vmul.f32 %v1010, %v1010
      %v1049 = vmul.f32 %v1015, %v1015
      %v1050 = vmul.f32 %v1020, %v1020
      %v1051 = vmul.f32 %v1025, %v1025
      %v1052 = vmul.f32 %v1030, %v1030
      %v1053 = vmul.f32 %v1035, %v1035
      %1070 = vrot.lane.b32.xlu0 %v960, 120
      %v1071 = vpop.permute.xlu0 %1070
      %1072 = vrot.lane.b32.xlu0 %v965, 120
      %v1073 = vpop.permute.xlu0 %1072
      %1074 = vrot.lane.b32.xlu0 %v970, 120
      %v1075 = vpop.permute.xlu0 %1074
      %1076 = vrot.lane.b32.xlu0 %v975, 120
      %v1077 = vpop.permute.xlu0 %1076
      %1078 = vrot.lane.b32.xlu0 %v980, 120
      %v1079 = vpop.permute.xlu0 %1078
      %1080 = vrot.lane.b32.xlu0 %v985, 120
      %v1081 = vpop.permute.xlu0 %1080
      %1082 = vrot.lane.b32.xlu0 %v990, 120
      %v1083 = vpop.permute.xlu0 %1082
      %1084 = vrot.lane.b32.xlu0 %v995, 120
      %v1085 = vpop.permute.xlu0 %1084
      %1086 = vrot.lane.b32.xlu0 %v1000, 120
      %v1087 = vpop.permute.xlu0 %1086
      %1088 = vrot.lane.b32.xlu0 %v1005, 120
      %v1089 = vpop.permute.xlu0 %1088
      %1090 = vrot.lane.b32.xlu0 %v1010, 120
      %v1091 = vpop.permute.xlu0 %1090
      %1092 = vrot.lane.b32.xlu0 %v1015, 120
      %v1093 = vpop.permute.xlu0 %1092
      %1094 = vrot.lane.b32.xlu0 %v1020, 120
      %v1095 = vpop.permute.xlu0 %1094
      %1096 = vrot.lane.b32.xlu0 %v1025, 120
      %v1097 = vpop.permute.xlu0 %1096
      %1098 = vrot.lane.b32.xlu0 %v1030, 120
      %v1099 = vpop.permute.xlu0 %1098
      %1100 = vrot.lane.b32.xlu0 %v1035, 120
      %v1101 = vpop.permute.xlu0 %1100
      %v1118 = vsub.f32 %v1038, %v1071
      %v1119 = vsub.f32 %v1039, %v1073
      %v1120 = vsub.f32 %v1040, %v1075
      %v1121 = vsub.f32 %v1041, %v1077
      %v1122 = vsub.f32 %v1042, %v1079
      %v1123 = vsub.f32 %v1043, %v1081
      %v1124 = vsub.f32 %v1044, %v1083
      %v1125 = vsub.f32 %v1045, %v1085
      %v1126 = vsub.f32 %v1046, %v1087
      %v1127 = vsub.f32 %v1047, %v1089
      %v1128 = vsub.f32 %v1048, %v1091
      %v1129 = vsub.f32 %v1049, %v1093
      %v1130 = vsub.f32 %v1050, %v1095
      %v1131 = vsub.f32 %v1051, %v1097
      %v1132 = vsub.f32 %v1052, %v1099
      %v1133 = vsub.f32 %v1053, %v1101
      %v1134 = vmul.f32 %v1118, 0.5
      %v1135 = vmul.f32 %v1119, 0.5
      %v1136 = vmul.f32 %v1120, 0.5
      %v1137 = vmul.f32 %v1121, 0.5
      %v1138 = vmul.f32 %v1122, 0.5
      %v1139 = vmul.f32 %v1123, 0.5
      %v1140 = vmul.f32 %v1124, 0.5
      %v1141 = vmul.f32 %v1125, 0.5
      %v1142 = vmul.f32 %v1126, 0.5
      %v1143 = vmul.f32 %v1127, 0.5
      %v1144 = vmul.f32 %v1128, 0.5
      %v1145 = vmul.f32 %v1129, 0.5
      %v1146 = vmul.f32 %v1130, 0.5
      %v1147 = vmul.f32 %v1131, 0.5
      %v1148 = vmul.f32 %v1132, 0.5
      %v1149 = vmul.f32 %v1133, 0.5
      %v1150 = vld [vmem:[%s2] sm:$0xff]
      %v1151 = vld [vmem:[%s2 + $0x8] sm:$0xff]
      %v1152 = vld [vmem:[%s2 + $0x10] sm:$0xff]
      %v1153 = vld [vmem:[%s2 + $0x18] sm:$0xff]
      %v1154 = vld [vmem:[%s3] sm:$0x1]
      %v1156 = vlaneseq
      %v1157 = vshrl.u32 %v1156, 7
      %v1158 = vsub.s32 0, %v1157
      %v1159 = vrot.slane %v1154, %v1158
      %vm1161 = vcmask 261120
      %v1162 = vsel %vm1161, %v960, 0
      %v1164 = vsel %vm1161, %v965, 0
      %v1166 = vsel %vm1161, %v970, 0
      %v1168 = vsel %vm1161, %v975, 0
      %v1170 = vsel %vm1161, %v980, 0
      %v1172 = vsel %vm1161, %v985, 0
      %v1174 = vsel %vm1161, %v990, 0
      %v1176 = vsel %vm1161, %v995, 0
      %v1178 = vsel %vm1161, %v1000, 0
      %v1180 = vsel %vm1161, %v1005, 0
      %v1182 = vsel %vm1161, %v1010, 0
      %v1184 = vsel %vm1161, %v1015, 0
      %v1186 = vsel %vm1161, %v1020, 0
      %v1188 = vsel %vm1161, %v1025, 0
      %v1190 = vsel %vm1161, %v1030, 0
      %v1192 = vsel %vm1161, %v1035, 0
      %1194 = vmatprep.subr.mxu0 0.0
      %1195 = vmatpush1.msra.mxu0 %v1150
      %1196 = vmatprep.subr.mxu0 0.0
      %1197 = vmatpush1.msra.mxu0 %v1151
      %1198 = vmatprep.subr.mxu0 0.0
      %1199 = vmatpush1.msra.mxu0 %v1152
      %1200 = vmatprep.subr.mxu0 0.0
      %1201 = vmatpush1.msra.mxu0 %v1153
      %1202 = vmatprep.subr.mxu0 0.0
      %1203 = vmatpush1.msra.mxu0 0.0
      %1204 = vmatprep.subr.mxu0 0.0
      %1205 = vmatpush1.msra.mxu0 0.0
      %1206 = vmatprep.subr.mxu0 0.0
      %1207 = vmatpush1.msra.mxu0 0.0
      %1208 = vmatprep.subr.mxu0 0.0
      %1209 = vmatpush1.msra.mxu0 0.0
      %1210 = vmatprep.subr.mxu0 0.0
      %1211 = vmatpush1.msra.mxu0 0.0
      %1212 = vmatprep.subr.mxu0 0.0
      %1213 = vmatpush1.msra.mxu0 0.0
      %1214 = vmatprep.subr.mxu0 0.0
      %1215 = vmatpush1.msra.mxu0 0.0
      %1216 = vmatprep.subr.mxu0 0.0
      %1217 = vmatpush1.msra.mxu0 0.0
      %1218 = vmatprep.subr.mxu0 0.0
      %1219 = vmatpush1.msra.mxu0 0.0
      %1220 = vmatprep.subr.mxu0 0.0
      %1221 = vmatpush1.msra.mxu0 0.0
      %1222 = vmatprep.subr.mxu0 0.0
      %1223 = vmatpush1.msra.mxu0 0.0
      %1224 = vmatprep.subr.mxu0 0.0
      %1225 = vmatpush1.msra.mxu0 0.0
      %1226 = vmatprep.subr.mxu0 0.0
      %1227 = vmatpush1.msra.mxu0 0.0
      %1228 = vmatprep.subr.mxu0 0.0
      %1229 = vmatpush1.msra.mxu0 0.0
      %1230 = vmatprep.subr.mxu0 0.0
      %1231 = vmatpush1.msra.mxu0 0.0
      %1232 = vmatprep.subr.mxu0 0.0
      %1233 = vmatpush1.msra.mxu0 0.0
      %1234 = vmatprep.subr.mxu0 0.0
      %1235 = vmatpush1.msra.mxu0 0.0
      %1236 = vmatprep.subr.mxu0 0.0
      %1237 = vmatpush1.msra.mxu0 0.0
      %1238 = vmatprep.subr.mxu0 0.0
      %1239 = vmatpush1.msra.mxu0 0.0
      %1240 = vmatprep.subr.mxu0 0.0
      %1241 = vmatpush1.msra.mxu0 0.0
      %1242 = vmatprep.subr.mxu0 0.0
      %1243 = vmatpush1.msra.mxu0 0.0
      %1244 = vmatprep.subr.mxu0 0.0
      %1245 = vmatpush1.msra.mxu0 0.0
      %1246 = vmatprep.subr.mxu0 0.0
      %1247 = vmatpush1.msra.mxu0 0.0
      %1248 = vmatprep.subr.mxu0 0.0
      %1249 = vmatpush1.msra.mxu0 0.0
      %1250 = vmatprep.subr.mxu0 0.0
      %1251 = vmatpush1.msra.mxu0 0.0
      %1252 = vmatprep.subr.mxu0 0.0
      %1253 = vmatpush1.msra.mxu0 0.0
      %1254 = vmatprep.subr.mxu0 0.0
      %1255 = vmatpush1.msra.mxu0 0.0
      %1256 = vmatprep.subr.mxu0 0.0
      %1257 = vmatpush1.msra.mxu0 0.0
      %1258 = vmatprep.mubr.f32.mxu0 0.0
      %1259 = vmatmul.mubr.f32.gmra.mrb[0].mxu0 %v1162
      %v1260 = vpop.f32.mrb[0].mxu0
      %v1261 = vadd.f32 %v1159, %v1260
      %v1262 = vpop.f32.mrb[0].mxu0
      %1263 = vmatprep.mubr.f32.mxu0 0.0
      %1264 = vmatmul.mubr.f32.gmra.mrb[0].mxu0 %v1164
      %v1265 = vpop.f32.mrb[0].mxu0
      %v1266 = vadd.f32 %v1159, %v1265
      %v1267 = vpop.f32.mrb[0].mxu0
      %1268 = vmatprep.mubr.f32.mxu0 0.0
      %1269 = vmatmul.mubr.f32.gmra.mrb[0].mxu0 %v1166
      %v1270 = vpop.f32.mrb[0].mxu0
      %v1271 = vadd.f32 %v1159, %v1270
      %v1272 = vpop.f32.mrb[0].mxu0
      %1273 = vmatprep.mubr.f32.mxu0 0.0
      %1274 = vmatmul.mubr.f32.gmra.mrb[0].mxu0 %v1168
      %v1275 = vpop.f32.mrb[0].mxu0
      %v1276 = vadd.f32 %v1159, %v1275
      %v1277 = vpop.f32.mrb[0].mxu0
      %1278 = vmatprep.mubr.f32.mxu0 0.0
      %1279 = vmatmul.mubr.f32.gmra.mrb[0].mxu0 %v1170
      %v1280 = vpop.f32.mrb[0].mxu0
      %v1281 = vadd.f32 %v1159, %v1280
      %v1282 = vpop.f32.mrb[0].mxu0
      %1283 = vmatprep.mubr.f32.mxu0 0.0
      %1284 = vmatmul.mubr.f32.gmra.mrb[0].mxu0 %v1172
      %v1285 = vpop.f32.mrb[0].mxu0
      %v1286 = vadd.f32 %v1159, %v1285
      %v1287 = vpop.f32.mrb[0].mxu0
      %1288 = vmatprep.mubr.f32.mxu0 0.0
      %1289 = vmatmul.mubr.f32.gmra.mrb[0].mxu0 %v1174
      %v1290 = vpop.f32.mrb[0].mxu0
      %v1291 = vadd.f32 %v1159, %v1290
      %v1292 = vpop.f32.mrb[0].mxu0
      %1293 = vmatprep.mubr.f32.mxu0 0.0
      %1294 = vmatmul.mubr.f32.gmra.mrb[0].mxu0 %v1176
      %v1295 = vpop.f32.mrb[0].mxu0
      %v1296 = vadd.f32 %v1159, %v1295
      %v1297 = vpop.f32.mrb[0].mxu0
      %1298 = vmatprep.mubr.f32.mxu0 0.0
      %1299 = vmatmul.mubr.f32.gmra.mrb[0].mxu0 %v1178
      %v1300 = vpop.f32.mrb[0].mxu0
      %v1301 = vadd.f32 %v1159, %v1300
      %v1302 = vpop.f32.mrb[0].mxu0
      %1303 = vmatprep.mubr.f32.mxu0 0.0
      %1304 = vmatmul.mubr.f32.gmra.mrb[0].mxu0 %v1180
      %v1305 = vpop.f32.mrb[0].mxu0
      %v1306 = vadd.f32 %v1159, %v1305
      %v1307 = vpop.f32.mrb[0].mxu0
      %1308 = vmatprep.mubr.f32.mxu0 0.0
      %1309 = vmatmul.mubr.f32.gmra.mrb[0].mxu0 %v1182
      %v1310 = vpop.f32.mrb[0].mxu0
      %v1311 = vadd.f32 %v1159, %v1310
      %v1312 = vpop.f32.mrb[0].mxu0
      %1313 = vmatprep.mubr.f32.mxu0 0.0
      %1314 = vmatmul.mubr.f32.gmra.mrb[0].mxu0 %v1184
      %v1315 = vpop.f32.mrb[0].mxu0
      %v1316 = vadd.f32 %v1159, %v1315
      %v1317 = vpop.f32.mrb[0].mxu0
      %1318 = vmatprep.mubr.f32.mxu0 0.0
      %1319 = vmatmul.mubr.f32.gmra.mrb[0].mxu0 %v1186
      %v1320 = vpop.f32.mrb[0].mxu0
      %v1321 = vadd.f32 %v1159, %v1320
      %v1322 = vpop.f32.mrb[0].mxu0
      %1323 = vmatprep.mubr.f32.mxu0 0.0
      %1324 = vmatmul.mubr.f32.gmra.mrb[0].mxu0 %v1188
      %v1325 = vpop.f32.mrb[0].mxu0
      %v1326 = vadd.f32 %v1159, %v1325
      %v1327 = vpop.f32.mrb[0].mxu0
      %1328 = vmatprep.mubr.f32.mxu0 0.0
      %1329 = vmatmul.mubr.f32.gmra.mrb[0].mxu0 %v1190
      %v1330 = vpop.f32.mrb[0].mxu0
      %v1331 = vadd.f32 %v1159, %v1330
      %v1332 = vpop.f32.mrb[0].mxu0
      %1333 = vmatprep.mubr.f32.mxu0 0.0
      %1334 = vmatmul.mubr.f32.gmra.mrb[0].mxu0 %v1192
      %v1335 = vpop.f32.mrb[0].mxu0
      %v1336 = vadd.f32 %v1159, %v1335
      %v1337 = vpop.f32.mrb[0].mxu0
      %1338 = vdwg.mxu0
      %v1339 = vmax.f32 %v1261, 0.0
      %v1340 = vmax.f32 %v1266, 0.0
      %v1341 = vmax.f32 %v1271, 0.0
      %v1342 = vmax.f32 %v1276, 0.0
      %v1343 = vmax.f32 %v1281, 0.0
      %v1344 = vmax.f32 %v1286, 0.0
      %v1345 = vmax.f32 %v1291, 0.0
      %v1346 = vmax.f32 %v1296, 0.0
      %v1347 = vmax.f32 %v1301, 0.0
      %v1348 = vmax.f32 %v1306, 0.0
      %v1349 = vmax.f32 %v1311, 0.0
      %v1350 = vmax.f32 %v1316, 0.0
      %v1351 = vmax.f32 %v1321, 0.0
      %v1352 = vmax.f32 %v1326, 0.0
      %v1353 = vmax.f32 %v1331, 0.0
      %v1354 = vmax.f32 %v1336, 0.0
      %v1355 = vld [vmem:[%s4] sm:$0xff]
      %v1356 = vld [vmem:[%s4 + $0x8] sm:$0xff]
      %v1357 = vld [vmem:[%s4 + $0x10] sm:$0xff]
      %v1358 = vld [vmem:[%s4 + $0x18] sm:$0xff]
      %v1359 = vld [vmem:[%s5] sm:$0x1]
      %v1361 = vlaneseq
      %v1362 = vshrl.u32 %v1361, 7
      %v1363 = vsub.s32 0, %v1362
      %v1364 = vrot.slane %v1359, %v1363
      %v1367 = vsel %vm1161, %v1339, 0
      %v1370 = vsel %vm1161, %v1340, 0
      %v1373 = vsel %vm1161, %v1341, 0
      %v1376 = vsel %vm1161, %v1342, 0
      %v1379 = vsel %vm1161, %v1343, 0
      %v1382 = vsel %vm1161, %v1344, 0
      %v1385 = vsel %vm1161, %v1345, 0
      %v1388 = vsel %vm1161, %v1346, 0
      %v1391 = vsel %vm1161, %v1347, 0
      %v1394 = vsel %vm1161, %v1348, 0
      %v1397 = vsel %vm1161, %v1349, 0
      %v1400 = vsel %vm1161, %v1350, 0
      %v1403 = vsel %vm1161, %v1351, 0
      %v1406 = vsel %vm1161, %v1352, 0
      %v1409 = vsel %vm1161, %v1353, 0
      %v1412 = vsel %vm1161, %v1354, 0
      %1414 = vmatprep.subr.mxu0 0.0
      %1415 = vmatpush1.msra.mxu0 %v1355
      %1416 = vmatprep.subr.mxu0 0.0
      %1417 = vmatpush1.msra.mxu0 %v1356
      %1418 = vmatprep.subr.mxu0 0.0
      %1419 = vmatpush1.msra.mxu0 %v1357
      %1420 = vmatprep.subr.mxu0 0.0
      %1421 = vmatpush1.msra.mxu0 %v1358
      %1422 = vmatprep.subr.mxu0 0.0
      %1423 = vmatpush1.msra.mxu0 0.0
      %1424 = vmatprep.subr.mxu0 0.0
      %1425 = vmatpush1.msra.mxu0 0.0
      %1426 = vmatprep.subr.mxu0 0.0
      %1427 = vmatpush1.msra.mxu0 0.0
      %1428 = vmatprep.subr.mxu0 0.0
      %1429 = vmatpush1.msra.mxu0 0.0
      %1430 = vmatprep.subr.mxu0 0.0
      %1431 = vmatpush1.msra.mxu0 0.0
      %1432 = vmatprep.subr.mxu0 0.0
      %1433 = vmatpush1.msra.mxu0 0.0
      %1434 = vmatprep.subr.mxu0 0.0
      %1435 = vmatpush1.msra.mxu0 0.0
      %1436 = vmatprep.subr.mxu0 0.0
      %1437 = vmatpush1.msra.mxu0 0.0
      %1438 = vmatprep.subr.mxu0 0.0
      %1439 = vmatpush1.msra.mxu0 0.0
      %1440 = vmatprep.subr.mxu0 0.0
      %1441 = vmatpush1.msra.mxu0 0.0
      %1442 = vmatprep.subr.mxu0 0.0
      %1443 = vmatpush1.msra.mxu0 0.0
      %1444 = vmatprep.subr.mxu0 0.0
      %1445 = vmatpush1.msra.mxu0 0.0
      %1446 = vmatprep.subr.mxu0 0.0
      %1447 = vmatpush1.msra.mxu0 0.0
      %1448 = vmatprep.subr.mxu0 0.0
      %1449 = vmatpush1.msra.mxu0 0.0
      %1450 = vmatprep.subr.mxu0 0.0
      %1451 = vmatpush1.msra.mxu0 0.0
      %1452 = vmatprep.subr.mxu0 0.0
      %1453 = vmatpush1.msra.mxu0 0.0
      %1454 = vmatprep.subr.mxu0 0.0
      %1455 = vmatpush1.msra.mxu0 0.0
      %1456 = vmatprep.subr.mxu0 0.0
      %1457 = vmatpush1.msra.mxu0 0.0
      %1458 = vmatprep.subr.mxu0 0.0
      %1459 = vmatpush1.msra.mxu0 0.0
      %1460 = vmatprep.subr.mxu0 0.0
      %1461 = vmatpush1.msra.mxu0 0.0
      %1462 = vmatprep.subr.mxu0 0.0
      %1463 = vmatpush1.msra.mxu0 0.0
      %1464 = vmatprep.subr.mxu0 0.0
      %1465 = vmatpush1.msra.mxu0 0.0
      %1466 = vmatprep.subr.mxu0 0.0
      %1467 = vmatpush1.msra.mxu0 0.0
      %1468 = vmatprep.subr.mxu0 0.0
      %1469 = vmatpush1.msra.mxu0 0.0
      %1470 = vmatprep.subr.mxu0 0.0
      %1471 = vmatpush1.msra.mxu0 0.0
      %1472 = vmatprep.subr.mxu0 0.0
      %1473 = vmatpush1.msra.mxu0 0.0
      %1474 = vmatprep.subr.mxu0 0.0
      %1475 = vmatpush1.msra.mxu0 0.0
      %1476 = vmatprep.subr.mxu0 0.0
      %1477 = vmatpush1.msra.mxu0 0.0
      %1478 = vmatprep.mubr.f32.mxu0 0.0
      %1479 = vmatmul.mubr.f32.gmra.mrb[0].mxu0 %v1367
      %v1480 = vpop.f32.mrb[0].mxu0
      %v1481 = vadd.f32 %v1364, %v1480
      %v1482 = vpop.f32.mrb[0].mxu0
      %1483 = vmatprep.mubr.f32.mxu0 0.0
      %1484 = vmatmul.mubr.f32.gmra.mrb[0].mxu0 %v1370
      %v1485 = vpop.f32.mrb[0].mxu0
      %v1486 = vadd.f32 %v1364, %v1485
      %v1487 = vpop.f32.mrb[0].mxu0
      %1488 = vmatprep.mubr.f32.mxu0 0.0
      %1489 = vmatmul.mubr.f32.gmra.mrb[0].mxu0 %v1373
      %v1490 = vpop.f32.mrb[0].mxu0
      %v1491 = vadd.f32 %v1364, %v1490
      %v1492 = vpop.f32.mrb[0].mxu0
      %1493 = vmatprep.mubr.f32.mxu0 0.0
      %1494 = vmatmul.mubr.f32.gmra.mrb[0].mxu0 %v1376
      %v1495 = vpop.f32.mrb[0].mxu0
      %v1496 = vadd.f32 %v1364, %v1495
      %v1497 = vpop.f32.mrb[0].mxu0
      %1498 = vmatprep.mubr.f32.mxu0 0.0
      %1499 = vmatmul.mubr.f32.gmra.mrb[0].mxu0 %v1379
      %v1500 = vpop.f32.mrb[0].mxu0
      %v1501 = vadd.f32 %v1364, %v1500
      %v1502 = vpop.f32.mrb[0].mxu0
      %1503 = vmatprep.mubr.f32.mxu0 0.0
      %1504 = vmatmul.mubr.f32.gmra.mrb[0].mxu0 %v1382
      %v1505 = vpop.f32.mrb[0].mxu0
      %v1506 = vadd.f32 %v1364, %v1505
      %v1507 = vpop.f32.mrb[0].mxu0
      %1508 = vmatprep.mubr.f32.mxu0 0.0
      %1509 = vmatmul.mubr.f32.gmra.mrb[0].mxu0 %v1385
      %v1510 = vpop.f32.mrb[0].mxu0
      %v1511 = vadd.f32 %v1364, %v1510
      %v1512 = vpop.f32.mrb[0].mxu0
      %1513 = vmatprep.mubr.f32.mxu0 0.0
      %1514 = vmatmul.mubr.f32.gmra.mrb[0].mxu0 %v1388
      %v1515 = vpop.f32.mrb[0].mxu0
      %v1516 = vadd.f32 %v1364, %v1515
      %v1517 = vpop.f32.mrb[0].mxu0
      %1518 = vmatprep.mubr.f32.mxu0 0.0
      %1519 = vmatmul.mubr.f32.gmra.mrb[0].mxu0 %v1391
      %v1520 = vpop.f32.mrb[0].mxu0
      %v1521 = vadd.f32 %v1364, %v1520
      %v1522 = vpop.f32.mrb[0].mxu0
      %1523 = vmatprep.mubr.f32.mxu0 0.0
      %1524 = vmatmul.mubr.f32.gmra.mrb[0].mxu0 %v1394
      %v1525 = vpop.f32.mrb[0].mxu0
      %v1526 = vadd.f32 %v1364, %v1525
      %v1527 = vpop.f32.mrb[0].mxu0
      %1528 = vmatprep.mubr.f32.mxu0 0.0
      %1529 = vmatmul.mubr.f32.gmra.mrb[0].mxu0 %v1397
      %v1530 = vpop.f32.mrb[0].mxu0
      %v1531 = vadd.f32 %v1364, %v1530
      %v1532 = vpop.f32.mrb[0].mxu0
      %1533 = vmatprep.mubr.f32.mxu0 0.0
      %1534 = vmatmul.mubr.f32.gmra.mrb[0].mxu0 %v1400
      %v1535 = vpop.f32.mrb[0].mxu0
      %v1536 = vadd.f32 %v1364, %v1535
      %v1537 = vpop.f32.mrb[0].mxu0
      %1538 = vmatprep.mubr.f32.mxu0 0.0
      %1539 = vmatmul.mubr.f32.gmra.mrb[0].mxu0 %v1403
      %v1540 = vpop.f32.mrb[0].mxu0
      %v1541 = vadd.f32 %v1364, %v1540
      %v1542 = vpop.f32.mrb[0].mxu0
      %1543 = vmatprep.mubr.f32.mxu0 0.0
      %1544 = vmatmul.mubr.f32.gmra.mrb[0].mxu0 %v1406
      %v1545 = vpop.f32.mrb[0].mxu0
      %v1546 = vadd.f32 %v1364, %v1545
      %v1547 = vpop.f32.mrb[0].mxu0
      %1548 = vmatprep.mubr.f32.mxu0 0.0
      %1549 = vmatmul.mubr.f32.gmra.mrb[0].mxu0 %v1409
      %v1550 = vpop.f32.mrb[0].mxu0
      %v1551 = vadd.f32 %v1364, %v1550
      %v1552 = vpop.f32.mrb[0].mxu0
      %1553 = vmatprep.mubr.f32.mxu0 0.0
      %1554 = vmatmul.mubr.f32.gmra.mrb[0].mxu0 %v1412
      %v1555 = vpop.f32.mrb[0].mxu0
      %v1556 = vadd.f32 %v1364, %v1555
      %v1557 = vpop.f32.mrb[0].mxu0
      %1558 = vdwg.mxu0
      %v1559 = vmax.f32 %v1481, 0.0
      %v1560 = vmax.f32 %v1486, 0.0
      %v1561 = vmax.f32 %v1491, 0.0
      %v1562 = vmax.f32 %v1496, 0.0
      %v1563 = vmax.f32 %v1501, 0.0
      %v1564 = vmax.f32 %v1506, 0.0
      %v1565 = vmax.f32 %v1511, 0.0
      %v1566 = vmax.f32 %v1516, 0.0
      %v1567 = vmax.f32 %v1521, 0.0
      %v1568 = vmax.f32 %v1526, 0.0
      %v1569 = vmax.f32 %v1531, 0.0
      %v1570 = vmax.f32 %v1536, 0.0
      %v1571 = vmax.f32 %v1541, 0.0
      %v1572 = vmax.f32 %v1546, 0.0
      %v1573 = vmax.f32 %v1551, 0.0
      %v1574 = vmax.f32 %v1556, 0.0
      %v1575 = vld [vmem:[%s6] sm:$0xff]
      %v1576 = vld [vmem:[%s7] sm:$0xf]
      %1577 = vrot.lane.b32.xlu0 %v960, 96
      %v1578 = vpop.permute.xlu0 %1577
      %1579 = vrot.lane.b32.xlu0 %v965, 96
      %v1580 = vpop.permute.xlu0 %1579
      %1581 = vrot.lane.b32.xlu0 %v970, 96
      %v1582 = vpop.permute.xlu0 %1581
      %1583 = vrot.lane.b32.xlu0 %v975, 96
      %v1584 = vpop.permute.xlu0 %1583
      %1585 = vrot.lane.b32.xlu0 %v980, 96
      %v1586 = vpop.permute.xlu0 %1585
      %1587 = vrot.lane.b32.xlu0 %v985, 96
      %v1588 = vpop.permute.xlu0 %1587
      %1589 = vrot.lane.b32.xlu0 %v990, 96
      %v1590 = vpop.permute.xlu0 %1589
      %1591 = vrot.lane.b32.xlu0 %v995, 96
      %v1592 = vpop.permute.xlu0 %1591
      %1593 = vrot.lane.b32.xlu0 %v1000, 96
      %v1594 = vpop.permute.xlu0 %1593
      %1595 = vrot.lane.b32.xlu0 %v1005, 96
      %v1596 = vpop.permute.xlu0 %1595
      %1597 = vrot.lane.b32.xlu0 %v1010, 96
      %v1598 = vpop.permute.xlu0 %1597
      %1599 = vrot.lane.b32.xlu0 %v1015, 96
      %v1600 = vpop.permute.xlu0 %1599
      %1601 = vrot.lane.b32.xlu0 %v1020, 96
      %v1602 = vpop.permute.xlu0 %1601
      %1603 = vrot.lane.b32.xlu0 %v1025, 96
      %v1604 = vpop.permute.xlu0 %1603
      %1605 = vrot.lane.b32.xlu0 %v1030, 96
      %v1606 = vpop.permute.xlu0 %1605
      %1607 = vrot.lane.b32.xlu0 %v1035, 96
      %v1608 = vpop.permute.xlu0 %1607
      %vm1609 = vcmask 31744
      %v1610 = vsel %vm1609, %v1578, 0
      %v1612 = vsel %vm1609, %v1580, 0
      %v1614 = vsel %vm1609, %v1582, 0
      %v1616 = vsel %vm1609, %v1584, 0
      %v1618 = vsel %vm1609, %v1586, 0
      %v1620 = vsel %vm1609, %v1588, 0
      %v1622 = vsel %vm1609, %v1590, 0
      %v1624 = vsel %vm1609, %v1592, 0
      %v1626 = vsel %vm1609, %v1594, 0
      %v1628 = vsel %vm1609, %v1596, 0
      %v1630 = vsel %vm1609, %v1598, 0
      %v1632 = vsel %vm1609, %v1600, 0
      %v1634 = vsel %vm1609, %v1602, 0
      %v1636 = vsel %vm1609, %v1604, 0
      %v1638 = vsel %vm1609, %v1606, 0
      %v1640 = vsel %vm1609, %v1608, 0
      %vm1642 = vcmask 1043456
      %v1644 = vsel %vm1642, %v1576, 0
      %1646 = vmatprep.subr.mxu0 0.0
      %1647 = vmatpush1.msra.mxu0 %v1644
      %1648 = vmatprep.subr.mxu0 0.0
      %1649 = vmatpush1.msra.mxu0 0.0
      %1650 = vmatprep.subr.mxu0 0.0
      %1651 = vmatpush1.msra.mxu0 0.0
      %1652 = vmatprep.subr.mxu0 0.0
      %1653 = vmatpush1.msra.mxu0 0.0
      %1654 = vmatprep.subr.mxu0 0.0
      %1655 = vmatpush1.msra.mxu0 0.0
      %1656 = vmatprep.subr.mxu0 0.0
      %1657 = vmatpush1.msra.mxu0 0.0
      %1658 = vmatprep.subr.mxu0 0.0
      %1659 = vmatpush1.msra.mxu0 0.0
      %1660 = vmatprep.subr.mxu0 0.0
      %1661 = vmatpush1.msra.mxu0 0.0
      %1662 = vmatprep.subr.mxu0 0.0
      %1663 = vmatpush1.msra.mxu0 0.0
      %1664 = vmatprep.subr.mxu0 0.0
      %1665 = vmatpush1.msra.mxu0 0.0
      %1666 = vmatprep.subr.mxu0 0.0
      %1667 = vmatpush1.msra.mxu0 0.0
      %1668 = vmatprep.subr.mxu0 0.0
      %1669 = vmatpush1.msra.mxu0 0.0
      %1670 = vmatprep.subr.mxu0 0.0
      %1671 = vmatpush1.msra.mxu0 0.0
      %1672 = vmatprep.subr.mxu0 0.0
      %1673 = vmatpush1.msra.mxu0 0.0
      %1674 = vmatprep.subr.mxu0 0.0
      %1675 = vmatpush1.msra.mxu0 0.0
      %1676 = vmatprep.subr.mxu0 0.0
      %1677 = vmatpush1.msra.mxu0 0.0
      %1678 = vmatprep.subr.mxu0 0.0
      %1679 = vmatpush1.msra.mxu0 0.0
      %1680 = vmatprep.subr.mxu0 0.0
      %1681 = vmatpush1.msra.mxu0 0.0
      %1682 = vmatprep.subr.mxu0 0.0
      %1683 = vmatpush1.msra.mxu0 0.0
      %1684 = vmatprep.subr.mxu0 0.0
      %1685 = vmatpush1.msra.mxu0 0.0
      %1686 = vmatprep.subr.mxu0 0.0
      %1687 = vmatpush1.msra.mxu0 0.0
      %1688 = vmatprep.subr.mxu0 0.0
      %1689 = vmatpush1.msra.mxu0 0.0
      %1690 = vmatprep.subr.mxu0 0.0
      %1691 = vmatpush1.msra.mxu0 0.0
      %1692 = vmatprep.subr.mxu0 0.0
      %1693 = vmatpush1.msra.mxu0 0.0
      %1694 = vmatprep.subr.mxu0 0.0
      %1695 = vmatpush1.msra.mxu0 0.0
      %1696 = vmatprep.subr.mxu0 0.0
      %1697 = vmatpush1.msra.mxu0 0.0
      %1698 = vmatprep.subr.mxu0 0.0
      %1699 = vmatpush1.msra.mxu0 0.0
      %1700 = vmatprep.subr.mxu0 0.0
      %1701 = vmatpush1.msra.mxu0 0.0
      %1702 = vmatprep.subr.mxu0 0.0
      %1703 = vmatpush1.msra.mxu0 0.0
      %1704 = vmatprep.subr.mxu0 0.0
      %1705 = vmatpush1.msra.mxu0 0.0
      %1706 = vmatprep.subr.mxu0 0.0
      %1707 = vmatpush1.msra.mxu0 0.0
      %1708 = vmatprep.subr.mxu0 0.0
      %1709 = vmatpush1.msra.mxu0 0.0
      %1710 = vmatprep.mubr.f32.mxu0 0.0
      %1711 = vmatmul.mubr.f32.gmra.mrb[0].mxu0 %v1610
      %v1712 = vpop.f32.mrb[0].mxu0
      %v1713 = vadd.f32 0.0, %v1712
      %v1714 = vpop.f32.mrb[0].mxu0
      %1715 = vmatprep.mubr.f32.mxu0 0.0
      %1716 = vmatmul.mubr.f32.gmra.mrb[0].mxu0 %v1612
      %v1717 = vpop.f32.mrb[0].mxu0
      %v1718 = vadd.f32 0.0, %v1717
      %v1719 = vpop.f32.mrb[0].mxu0
      %1720 = vmatprep.mubr.f32.mxu0 0.0
      %1721 = vmatmul.mubr.f32.gmra.mrb[0].mxu0 %v1614
      %v1722 = vpop.f32.mrb[0].mxu0
      %v1723 = vadd.f32 0.0, %v1722
      %v1724 = vpop.f32.mrb[0].mxu0
      %1725 = vmatprep.mubr.f32.mxu0 0.0
      %1726 = vmatmul.mubr.f32.gmra.mrb[0].mxu0 %v1616
      %v1727 = vpop.f32.mrb[0].mxu0
      %v1728 = vadd.f32 0.0, %v1727
      %v1729 = vpop.f32.mrb[0].mxu0
      %1730 = vmatprep.mubr.f32.mxu0 0.0
      %1731 = vmatmul.mubr.f32.gmra.mrb[0].mxu0 %v1618
      %v1732 = vpop.f32.mrb[0].mxu0
      %v1733 = vadd.f32 0.0, %v1732
      %v1734 = vpop.f32.mrb[0].mxu0
      %1735 = vmatprep.mubr.f32.mxu0 0.0
      %1736 = vmatmul.mubr.f32.gmra.mrb[0].mxu0 %v1620
      %v1737 = vpop.f32.mrb[0].mxu0
      %v1738 = vadd.f32 0.0, %v1737
      %v1739 = vpop.f32.mrb[0].mxu0
      %1740 = vmatprep.mubr.f32.mxu0 0.0
      %1741 = vmatmul.mubr.f32.gmra.mrb[0].mxu0 %v1622
      %v1742 = vpop.f32.mrb[0].mxu0
      %v1743 = vadd.f32 0.0, %v1742
      %v1744 = vpop.f32.mrb[0].mxu0
      %1745 = vmatprep.mubr.f32.mxu0 0.0
      %1746 = vmatmul.mubr.f32.gmra.mrb[0].mxu0 %v1624
      %v1747 = vpop.f32.mrb[0].mxu0
      %v1748 = vadd.f32 0.0, %v1747
      %v1749 = vpop.f32.mrb[0].mxu0
      %1750 = vmatprep.mubr.f32.mxu0 0.0
      %1751 = vmatmul.mubr.f32.gmra.mrb[0].mxu0 %v1626
      %v1752 = vpop.f32.mrb[0].mxu0
      %v1753 = vadd.f32 0.0, %v1752
      %v1754 = vpop.f32.mrb[0].mxu0
      %1755 = vmatprep.mubr.f32.mxu0 0.0
      %1756 = vmatmul.mubr.f32.gmra.mrb[0].mxu0 %v1628
      %v1757 = vpop.f32.mrb[0].mxu0
      %v1758 = vadd.f32 0.0, %v1757
      %v1759 = vpop.f32.mrb[0].mxu0
      %1760 = vmatprep.mubr.f32.mxu0 0.0
      %1761 = vmatmul.mubr.f32.gmra.mrb[0].mxu0 %v1630
      %v1762 = vpop.f32.mrb[0].mxu0
      %v1763 = vadd.f32 0.0, %v1762
      %v1764 = vpop.f32.mrb[0].mxu0
      %1765 = vmatprep.mubr.f32.mxu0 0.0
      %1766 = vmatmul.mubr.f32.gmra.mrb[0].mxu0 %v1632
      %v1767 = vpop.f32.mrb[0].mxu0
      %v1768 = vadd.f32 0.0, %v1767
      %v1769 = vpop.f32.mrb[0].mxu0
      %1770 = vmatprep.mubr.f32.mxu0 0.0
      %1771 = vmatmul.mubr.f32.gmra.mrb[0].mxu0 %v1634
      %v1772 = vpop.f32.mrb[0].mxu0
      %v1773 = vadd.f32 0.0, %v1772
      %v1774 = vpop.f32.mrb[0].mxu0
      %1775 = vmatprep.mubr.f32.mxu0 0.0
      %1776 = vmatmul.mubr.f32.gmra.mrb[0].mxu0 %v1636
      %v1777 = vpop.f32.mrb[0].mxu0
      %v1778 = vadd.f32 0.0, %v1777
      %v1779 = vpop.f32.mrb[0].mxu0
      %1780 = vmatprep.mubr.f32.mxu0 0.0
      %1781 = vmatmul.mubr.f32.gmra.mrb[0].mxu0 %v1638
      %v1782 = vpop.f32.mrb[0].mxu0
      %v1783 = vadd.f32 0.0, %v1782
      %v1784 = vpop.f32.mrb[0].mxu0
      %1785 = vmatprep.mubr.f32.mxu0 0.0
      %1786 = vmatmul.mubr.f32.gmra.mrb[0].mxu0 %v1640
      %v1787 = vpop.f32.mrb[0].mxu0
      %v1788 = vadd.f32 0.0, %v1787
      %v1789 = vpop.f32.mrb[0].mxu0
      %1790 = vdwg.mxu0
      %1807 = vrot.lane.b32.xlu0 %v1134, 92
      %v1808 = vpop.permute.xlu0 %1807
      %1809 = vrot.lane.b32.xlu0 %v1135, 92
      %v1810 = vpop.permute.xlu0 %1809
      %1811 = vrot.lane.b32.xlu0 %v1136, 92
      %v1812 = vpop.permute.xlu0 %1811
      %1813 = vrot.lane.b32.xlu0 %v1137, 92
      %v1814 = vpop.permute.xlu0 %1813
      %1815 = vrot.lane.b32.xlu0 %v1138, 92
      %v1816 = vpop.permute.xlu0 %1815
      %1817 = vrot.lane.b32.xlu0 %v1139, 92
      %v1818 = vpop.permute.xlu0 %1817
      %1819 = vrot.lane.b32.xlu0 %v1140, 92
      %v1820 = vpop.permute.xlu0 %1819
      %1821 = vrot.lane.b32.xlu0 %v1141, 92
      %v1822 = vpop.permute.xlu0 %1821
      %1823 = vrot.lane.b32.xlu0 %v1142, 92
      %v1824 = vpop.permute.xlu0 %1823
      %1825 = vrot.lane.b32.xlu0 %v1143, 92
      %v1826 = vpop.permute.xlu0 %1825
      %1827 = vrot.lane.b32.xlu0 %v1144, 92
      %v1828 = vpop.permute.xlu0 %1827
      %1829 = vrot.lane.b32.xlu0 %v1145, 92
      %v1830 = vpop.permute.xlu0 %1829
      %1831 = vrot.lane.b32.xlu0 %v1146, 92
      %v1832 = vpop.permute.xlu0 %1831
      %1833 = vrot.lane.b32.xlu0 %v1147, 92
      %v1834 = vpop.permute.xlu0 %1833
      %1835 = vrot.lane.b32.xlu0 %v1148, 92
      %v1836 = vpop.permute.xlu0 %1835
      %1837 = vrot.lane.b32.xlu0 %v1149, 92
      %v1838 = vpop.permute.xlu0 %1837
      %vm1839 = vcmask 64512
      %v1840 = vsel %vm1839, %v1808, 0
      %v1842 = vsel %vm1839, %v1810, 0
      %v1844 = vsel %vm1839, %v1812, 0
      %v1846 = vsel %vm1839, %v1814, 0
      %v1848 = vsel %vm1839, %v1816, 0
      %v1850 = vsel %vm1839, %v1818, 0
      %v1852 = vsel %vm1839, %v1820, 0
      %v1854 = vsel %vm1839, %v1822, 0
      %v1856 = vsel %vm1839, %v1824, 0
      %v1858 = vsel %vm1839, %v1826, 0
      %v1860 = vsel %vm1839, %v1828, 0
      %v1862 = vsel %vm1839, %v1830, 0
      %v1864 = vsel %vm1839, %v1832, 0
      %v1866 = vsel %vm1839, %v1834, 0
      %v1868 = vsel %vm1839, %v1836, 0
      %v1870 = vsel %vm1839, %v1838, 0
      %1872 = vmatprep.subr.mxu0 0.0
      %1873 = vmatpush1.msra.mxu0 %v1575
      %1874 = vmatprep.subr.mxu0 0.0
      %1875 = vmatpush1.msra.mxu0 0.0
      %1876 = vmatprep.subr.mxu0 0.0
      %1877 = vmatpush1.msra.mxu0 0.0
      %1878 = vmatprep.subr.mxu0 0.0
      %1879 = vmatpush1.msra.mxu0 0.0
      %1880 = vmatprep.subr.mxu0 0.0
      %1881 = vmatpush1.msra.mxu0 0.0
      %1882 = vmatprep.subr.mxu0 0.0
      %1883 = vmatpush1.msra.mxu0 0.0
      %1884 = vmatprep.subr.mxu0 0.0
      %1885 = vmatpush1.msra.mxu0 0.0
      %1886 = vmatprep.subr.mxu0 0.0
      %1887 = vmatpush1.msra.mxu0 0.0
      %1888 = vmatprep.subr.mxu0 0.0
      %1889 = vmatpush1.msra.mxu0 0.0
      %1890 = vmatprep.subr.mxu0 0.0
      %1891 = vmatpush1.msra.mxu0 0.0
      %1892 = vmatprep.subr.mxu0 0.0
      %1893 = vmatpush1.msra.mxu0 0.0
      %1894 = vmatprep.subr.mxu0 0.0
      %1895 = vmatpush1.msra.mxu0 0.0
      %1896 = vmatprep.subr.mxu0 0.0
      %1897 = vmatpush1.msra.mxu0 0.0
      %1898 = vmatprep.subr.mxu0 0.0
      %1899 = vmatpush1.msra.mxu0 0.0
      %1900 = vmatprep.subr.mxu0 0.0
      %1901 = vmatpush1.msra.mxu0 0.0
      %1902 = vmatprep.subr.mxu0 0.0
      %1903 = vmatpush1.msra.mxu0 0.0
      %1904 = vmatprep.subr.mxu0 0.0
      %1905 = vmatpush1.msra.mxu0 0.0
      %1906 = vmatprep.subr.mxu0 0.0
      %1907 = vmatpush1.msra.mxu0 0.0
      %1908 = vmatprep.subr.mxu0 0.0
      %1909 = vmatpush1.msra.mxu0 0.0
      %1910 = vmatprep.subr.mxu0 0.0
      %1911 = vmatpush1.msra.mxu0 0.0
      %1912 = vmatprep.subr.mxu0 0.0
      %1913 = vmatpush1.msra.mxu0 0.0
      %1914 = vmatprep.subr.mxu0 0.0
      %1915 = vmatpush1.msra.mxu0 0.0
      %1916 = vmatprep.subr.mxu0 0.0
      %1917 = vmatpush1.msra.mxu0 0.0
      %1918 = vmatprep.subr.mxu0 0.0
      %1919 = vmatpush1.msra.mxu0 0.0
      %1920 = vmatprep.subr.mxu0 0.0
      %1921 = vmatpush1.msra.mxu0 0.0
      %1922 = vmatprep.subr.mxu0 0.0
      %1923 = vmatpush1.msra.mxu0 0.0
      %1924 = vmatprep.subr.mxu0 0.0
      %1925 = vmatpush1.msra.mxu0 0.0
      %1926 = vmatprep.subr.mxu0 0.0
      %1927 = vmatpush1.msra.mxu0 0.0
      %1928 = vmatprep.subr.mxu0 0.0
      %1929 = vmatpush1.msra.mxu0 0.0
      %1930 = vmatprep.subr.mxu0 0.0
      %1931 = vmatpush1.msra.mxu0 0.0
      %1932 = vmatprep.subr.mxu0 0.0
      %1933 = vmatpush1.msra.mxu0 0.0
      %1934 = vmatprep.subr.mxu0 0.0
      %1935 = vmatpush1.msra.mxu0 0.0
      %1936 = vmatprep.mubr.f32.mxu0 0.0
      %1937 = vmatmul.mubr.f32.gmra.mrb[0].mxu0 %v1840
      %v1938 = vpop.f32.mrb[0].mxu0
      %v1939 = vadd.f32 %v1713, %v1938
      %v1940 = vpop.f32.mrb[0].mxu0
      %1941 = vmatprep.mubr.f32.mxu0 0.0
      %1942 = vmatmul.mubr.f32.gmra.mrb[0].mxu0 %v1842
      %v1943 = vpop.f32.mrb[0].mxu0
      %v1944 = vadd.f32 %v1718, %v1943
      %v1945 = vpop.f32.mrb[0].mxu0
      %1946 = vmatprep.mubr.f32.mxu0 0.0
      %1947 = vmatmul.mubr.f32.gmra.mrb[0].mxu0 %v1844
      %v1948 = vpop.f32.mrb[0].mxu0
      %v1949 = vadd.f32 %v1723, %v1948
      %v1950 = vpop.f32.mrb[0].mxu0
      %1951 = vmatprep.mubr.f32.mxu0 0.0
      %1952 = vmatmul.mubr.f32.gmra.mrb[0].mxu0 %v1846
      %v1953 = vpop.f32.mrb[0].mxu0
      %v1954 = vadd.f32 %v1728, %v1953
      %v1955 = vpop.f32.mrb[0].mxu0
      %1956 = vmatprep.mubr.f32.mxu0 0.0
      %1957 = vmatmul.mubr.f32.gmra.mrb[0].mxu0 %v1848
      %v1958 = vpop.f32.mrb[0].mxu0
      %v1959 = vadd.f32 %v1733, %v1958
      %v1960 = vpop.f32.mrb[0].mxu0
      %1961 = vmatprep.mubr.f32.mxu0 0.0
      %1962 = vmatmul.mubr.f32.gmra.mrb[0].mxu0 %v1850
      %v1963 = vpop.f32.mrb[0].mxu0
      %v1964 = vadd.f32 %v1738, %v1963
      %v1965 = vpop.f32.mrb[0].mxu0
      %1966 = vmatprep.mubr.f32.mxu0 0.0
      %1967 = vmatmul.mubr.f32.gmra.mrb[0].mxu0 %v1852
      %v1968 = vpop.f32.mrb[0].mxu0
      %v1969 = vadd.f32 %v1743, %v1968
      %v1970 = vpop.f32.mrb[0].mxu0
      %1971 = vmatprep.mubr.f32.mxu0 0.0
      %1972 = vmatmul.mubr.f32.gmra.mrb[0].mxu0 %v1854
      %v1973 = vpop.f32.mrb[0].mxu0
      %v1974 = vadd.f32 %v1748, %v1973
      %v1975 = vpop.f32.mrb[0].mxu0
      %1976 = vmatprep.mubr.f32.mxu0 0.0
      %1977 = vmatmul.mubr.f32.gmra.mrb[0].mxu0 %v1856
      %v1978 = vpop.f32.mrb[0].mxu0
      %v1979 = vadd.f32 %v1753, %v1978
      %v1980 = vpop.f32.mrb[0].mxu0
      %1981 = vmatprep.mubr.f32.mxu0 0.0
      %1982 = vmatmul.mubr.f32.gmra.mrb[0].mxu0 %v1858
      %v1983 = vpop.f32.mrb[0].mxu0
      %v1984 = vadd.f32 %v1758, %v1983
      %v1985 = vpop.f32.mrb[0].mxu0
      %1986 = vmatprep.mubr.f32.mxu0 0.0
      %1987 = vmatmul.mubr.f32.gmra.mrb[0].mxu0 %v1860
      %v1988 = vpop.f32.mrb[0].mxu0
      %v1989 = vadd.f32 %v1763, %v1988
      %v1990 = vpop.f32.mrb[0].mxu0
      %1991 = vmatprep.mubr.f32.mxu0 0.0
      %1992 = vmatmul.mubr.f32.gmra.mrb[0].mxu0 %v1862
      %v1993 = vpop.f32.mrb[0].mxu0
      %v1994 = vadd.f32 %v1768, %v1993
      %v1995 = vpop.f32.mrb[0].mxu0
      %1996 = vmatprep.mubr.f32.mxu0 0.0
      %1997 = vmatmul.mubr.f32.gmra.mrb[0].mxu0 %v1864
      %v1998 = vpop.f32.mrb[0].mxu0
      %v1999 = vadd.f32 %v1773, %v1998
      %v2000 = vpop.f32.mrb[0].mxu0
      %2001 = vmatprep.mubr.f32.mxu0 0.0
      %2002 = vmatmul.mubr.f32.gmra.mrb[0].mxu0 %v1866
      %v2003 = vpop.f32.mrb[0].mxu0
      %v2004 = vadd.f32 %v1778, %v2003
      %v2005 = vpop.f32.mrb[0].mxu0
      %2006 = vmatprep.mubr.f32.mxu0 0.0
      %2007 = vmatmul.mubr.f32.gmra.mrb[0].mxu0 %v1868
      %v2008 = vpop.f32.mrb[0].mxu0
      %v2009 = vadd.f32 %v1783, %v2008
      %v2010 = vpop.f32.mrb[0].mxu0
      %2011 = vmatprep.mubr.f32.mxu0 0.0
      %2012 = vmatmul.mubr.f32.gmra.mrb[0].mxu0 %v1870
      %v2013 = vpop.f32.mrb[0].mxu0
      %v2014 = vadd.f32 %v1788, %v2013
      %v2015 = vpop.f32.mrb[0].mxu0
      %2016 = vdwg.mxu0
      %v2017 = vld [vmem:[%s8] sm:$0xff]
      %v2018 = vld [vmem:[%s8 + $0x8] sm:$0xff]
      %vm2019 = vcmask 130048
      %v2021 = vsel %vm2019, %v1559, 0
      %v2024 = vsel %vm2019, %v1560, 0
      %v2027 = vsel %vm2019, %v1561, 0
      %v2030 = vsel %vm2019, %v1562, 0
      %v2033 = vsel %vm2019, %v1563, 0
      %v2036 = vsel %vm2019, %v1564, 0
      %v2039 = vsel %vm2019, %v1565, 0
      %v2042 = vsel %vm2019, %v1566, 0
      %v2045 = vsel %vm2019, %v1567, 0
      %v2048 = vsel %vm2019, %v1568, 0
      %v2051 = vsel %vm2019, %v1569, 0
      %v2054 = vsel %vm2019, %v1570, 0
      %v2057 = vsel %vm2019, %v1571, 0
      %v2060 = vsel %vm2019, %v1572, 0
      %v2063 = vsel %vm2019, %v1573, 0
      %v2066 = vsel %vm2019, %v1574, 0
      %2068 = vmatprep.subr.mxu0 0.0
      %2069 = vmatpush1.msra.mxu0 %v2017
      %2070 = vmatprep.subr.mxu0 0.0
      %2071 = vmatpush1.msra.mxu0 %v2018
      %2072 = vmatprep.subr.mxu0 0.0
      %2073 = vmatpush1.msra.mxu0 0.0
      %2074 = vmatprep.subr.mxu0 0.0
      %2075 = vmatpush1.msra.mxu0 0.0
      %2076 = vmatprep.subr.mxu0 0.0
      %2077 = vmatpush1.msra.mxu0 0.0
      %2078 = vmatprep.subr.mxu0 0.0
      %2079 = vmatpush1.msra.mxu0 0.0
      %2080 = vmatprep.subr.mxu0 0.0
      %2081 = vmatpush1.msra.mxu0 0.0
      %2082 = vmatprep.subr.mxu0 0.0
      %2083 = vmatpush1.msra.mxu0 0.0
      %2084 = vmatprep.subr.mxu0 0.0
      %2085 = vmatpush1.msra.mxu0 0.0
      %2086 = vmatprep.subr.mxu0 0.0
      %2087 = vmatpush1.msra.mxu0 0.0
      %2088 = vmatprep.subr.mxu0 0.0
      %2089 = vmatpush1.msra.mxu0 0.0
      %2090 = vmatprep.subr.mxu0 0.0
      %2091 = vmatpush1.msra.mxu0 0.0
      %2092 = vmatprep.subr.mxu0 0.0
      %2093 = vmatpush1.msra.mxu0 0.0
      %2094 = vmatprep.subr.mxu0 0.0
      %2095 = vmatpush1.msra.mxu0 0.0
      %2096 = vmatprep.subr.mxu0 0.0
      %2097 = vmatpush1.msra.mxu0 0.0
      %2098 = vmatprep.subr.mxu0 0.0
      %2099 = vmatpush1.msra.mxu0 0.0
      %2100 = vmatprep.subr.mxu0 0.0
      %2101 = vmatpush1.msra.mxu0 0.0
      %2102 = vmatprep.subr.mxu0 0.0
      %2103 = vmatpush1.msra.mxu0 0.0
      %2104 = vmatprep.subr.mxu0 0.0
      %2105 = vmatpush1.msra.mxu0 0.0
      %2106 = vmatprep.subr.mxu0 0.0
      %2107 = vmatpush1.msra.mxu0 0.0
      %2108 = vmatprep.subr.mxu0 0.0
      %2109 = vmatpush1.msra.mxu0 0.0
      %2110 = vmatprep.subr.mxu0 0.0
      %2111 = vmatpush1.msra.mxu0 0.0
      %2112 = vmatprep.subr.mxu0 0.0
      %2113 = vmatpush1.msra.mxu0 0.0
      %2114 = vmatprep.subr.mxu0 0.0
      %2115 = vmatpush1.msra.mxu0 0.0
      %2116 = vmatprep.subr.mxu0 0.0
      %2117 = vmatpush1.msra.mxu0 0.0
      %2118 = vmatprep.subr.mxu0 0.0
      %2119 = vmatpush1.msra.mxu0 0.0
      %2120 = vmatprep.subr.mxu0 0.0
      %2121 = vmatpush1.msra.mxu0 0.0
      %2122 = vmatprep.subr.mxu0 0.0
      %2123 = vmatpush1.msra.mxu0 0.0
      %2124 = vmatprep.subr.mxu0 0.0
      %2125 = vmatpush1.msra.mxu0 0.0
      %2126 = vmatprep.subr.mxu0 0.0
      %2127 = vmatpush1.msra.mxu0 0.0
      %2128 = vmatprep.subr.mxu0 0.0
      %2129 = vmatpush1.msra.mxu0 0.0
      %2130 = vmatprep.subr.mxu0 0.0
      %2131 = vmatpush1.msra.mxu0 0.0
      %2132 = vmatprep.mubr.f32.mxu0 0.0
      %2133 = vmatmul.mubr.f32.gmra.mrb[0].mxu0 %v2021
      %v2134 = vpop.f32.mrb[0].mxu0
      %v2135 = vadd.f32 0.0, %v2134
      %v2136 = vpop.f32.mrb[0].mxu0
      %2137 = vmatprep.mubr.f32.mxu0 0.0
      %2138 = vmatmul.mubr.f32.gmra.mrb[0].mxu0 %v2024
      %v2139 = vpop.f32.mrb[0].mxu0
      %v2140 = vadd.f32 0.0, %v2139
      %v2141 = vpop.f32.mrb[0].mxu0
      %2142 = vmatprep.mubr.f32.mxu0 0.0
      %2143 = vmatmul.mubr.f32.gmra.mrb[0].mxu0 %v2027
      %v2144 = vpop.f32.mrb[0].mxu0
      %v2145 = vadd.f32 0.0, %v2144
      %v2146 = vpop.f32.mrb[0].mxu0
      %2147 = vmatprep.mubr.f32.mxu0 0.0
      %2148 = vmatmul.mubr.f32.gmra.mrb[0].mxu0 %v2030
      %v2149 = vpop.f32.mrb[0].mxu0
      %v2150 = vadd.f32 0.0, %v2149
      %v2151 = vpop.f32.mrb[0].mxu0
      %2152 = vmatprep.mubr.f32.mxu0 0.0
      %2153 = vmatmul.mubr.f32.gmra.mrb[0].mxu0 %v2033
      %v2154 = vpop.f32.mrb[0].mxu0
      %v2155 = vadd.f32 0.0, %v2154
      %v2156 = vpop.f32.mrb[0].mxu0
      %2157 = vmatprep.mubr.f32.mxu0 0.0
      %2158 = vmatmul.mubr.f32.gmra.mrb[0].mxu0 %v2036
      %v2159 = vpop.f32.mrb[0].mxu0
      %v2160 = vadd.f32 0.0, %v2159
      %v2161 = vpop.f32.mrb[0].mxu0
      %2162 = vmatprep.mubr.f32.mxu0 0.0
      %2163 = vmatmul.mubr.f32.gmra.mrb[0].mxu0 %v2039
      %v2164 = vpop.f32.mrb[0].mxu0
      %v2165 = vadd.f32 0.0, %v2164
      %v2166 = vpop.f32.mrb[0].mxu0
      %2167 = vmatprep.mubr.f32.mxu0 0.0
      %2168 = vmatmul.mubr.f32.gmra.mrb[0].mxu0 %v2042
      %v2169 = vpop.f32.mrb[0].mxu0
      %v2170 = vadd.f32 0.0, %v2169
      %v2171 = vpop.f32.mrb[0].mxu0
      %2172 = vmatprep.mubr.f32.mxu0 0.0
      %2173 = vmatmul.mubr.f32.gmra.mrb[0].mxu0 %v2045
      %v2174 = vpop.f32.mrb[0].mxu0
      %v2175 = vadd.f32 0.0, %v2174
      %v2176 = vpop.f32.mrb[0].mxu0
      %2177 = vmatprep.mubr.f32.mxu0 0.0
      %2178 = vmatmul.mubr.f32.gmra.mrb[0].mxu0 %v2048
      %v2179 = vpop.f32.mrb[0].mxu0
      %v2180 = vadd.f32 0.0, %v2179
      %v2181 = vpop.f32.mrb[0].mxu0
      %2182 = vmatprep.mubr.f32.mxu0 0.0
      %2183 = vmatmul.mubr.f32.gmra.mrb[0].mxu0 %v2051
      %v2184 = vpop.f32.mrb[0].mxu0
      %v2185 = vadd.f32 0.0, %v2184
      %v2186 = vpop.f32.mrb[0].mxu0
      %2187 = vmatprep.mubr.f32.mxu0 0.0
      %2188 = vmatmul.mubr.f32.gmra.mrb[0].mxu0 %v2054
      %v2189 = vpop.f32.mrb[0].mxu0
      %v2190 = vadd.f32 0.0, %v2189
      %v2191 = vpop.f32.mrb[0].mxu0
      %2192 = vmatprep.mubr.f32.mxu0 0.0
      %2193 = vmatmul.mubr.f32.gmra.mrb[0].mxu0 %v2057
      %v2194 = vpop.f32.mrb[0].mxu0
      %v2195 = vadd.f32 0.0, %v2194
      %v2196 = vpop.f32.mrb[0].mxu0
      %2197 = vmatprep.mubr.f32.mxu0 0.0
      %2198 = vmatmul.mubr.f32.gmra.mrb[0].mxu0 %v2060
      %v2199 = vpop.f32.mrb[0].mxu0
      %v2200 = vadd.f32 0.0, %v2199
      %v2201 = vpop.f32.mrb[0].mxu0
      %2202 = vmatprep.mubr.f32.mxu0 0.0
      %2203 = vmatmul.mubr.f32.gmra.mrb[0].mxu0 %v2063
      %v2204 = vpop.f32.mrb[0].mxu0
      %v2205 = vadd.f32 0.0, %v2204
      %v2206 = vpop.f32.mrb[0].mxu0
      %2207 = vmatprep.mubr.f32.mxu0 0.0
      %2208 = vmatmul.mubr.f32.gmra.mrb[0].mxu0 %v2066
      %v2209 = vpop.f32.mrb[0].mxu0
      %v2210 = vadd.f32 0.0, %v2209
      %v2211 = vpop.f32.mrb[0].mxu0
      %2212 = vdwg.mxu0
      %v2213 = vadd.f32 %v1939, %v2135
      %v2214 = vadd.f32 %v1944, %v2140
      %v2215 = vadd.f32 %v1949, %v2145
      %v2216 = vadd.f32 %v1954, %v2150
      %v2217 = vadd.f32 %v1959, %v2155
      %v2218 = vadd.f32 %v1964, %v2160
      %v2219 = vadd.f32 %v1969, %v2165
      %v2220 = vadd.f32 %v1974, %v2170
      %v2221 = vadd.f32 %v1979, %v2175
      %v2222 = vadd.f32 %v1984, %v2180
      %v2223 = vadd.f32 %v1989, %v2185
      %v2224 = vadd.f32 %v1994, %v2190
      %v2225 = vadd.f32 %v1999, %v2195
      %v2226 = vadd.f32 %v2004, %v2200
      %v2227 = vadd.f32 %v2009, %v2205
      %v2228 = vadd.f32 %v2014, %v2210
      %v2229 = vld [vmem:[%s9] sm:$0x1]
      %v2231 = vlaneseq
      %v2232 = vshrl.u32 %v2231, 7
      %v2233 = vsub.s32 0, %v2232
      %v2234 = vrot.slane %v2229, %v2233
      %v2236 = vadd.f32 %v2213, %v2234
      %v2237 = vadd.f32 %v2214, %v2234
      %v2238 = vadd.f32 %v2215, %v2234
      %v2239 = vadd.f32 %v2216, %v2234
      %v2240 = vadd.f32 %v2217, %v2234
      %v2241 = vadd.f32 %v2218, %v2234
      %v2242 = vadd.f32 %v2219, %v2234
      %v2243 = vadd.f32 %v2220, %v2234
      %v2244 = vadd.f32 %v2221, %v2234
      %v2245 = vadd.f32 %v2222, %v2234
      %v2246 = vadd.f32 %v2223, %v2234
      %v2247 = vadd.f32 %v2224, %v2234
      %v2248 = vadd.f32 %v2225, %v2234
      %v2249 = vadd.f32 %v2226, %v2234
      %v2250 = vadd.f32 %v2227, %v2234
      %v2251 = vadd.f32 %v2228, %v2234
      %2268 = vrot.lane.b32.xlu0 %v2236, 127
      %v2269 = vpop.permute.xlu0 %2268
      %2270 = vrot.lane.b32.xlu0 %v2237, 127
      %v2271 = vpop.permute.xlu0 %2270
      %2272 = vrot.lane.b32.xlu0 %v2238, 127
      %v2273 = vpop.permute.xlu0 %2272
      %2274 = vrot.lane.b32.xlu0 %v2239, 127
      %v2275 = vpop.permute.xlu0 %2274
      %2276 = vrot.lane.b32.xlu0 %v2240, 127
      %v2277 = vpop.permute.xlu0 %2276
      %2278 = vrot.lane.b32.xlu0 %v2241, 127
      %v2279 = vpop.permute.xlu0 %2278
      %2280 = vrot.lane.b32.xlu0 %v2242, 127
      %v2281 = vpop.permute.xlu0 %2280
      %2282 = vrot.lane.b32.xlu0 %v2243, 127
      %v2283 = vpop.permute.xlu0 %2282
      %2284 = vrot.lane.b32.xlu0 %v2244, 127
      %v2285 = vpop.permute.xlu0 %2284
      %2286 = vrot.lane.b32.xlu0 %v2245, 127
      %v2287 = vpop.permute.xlu0 %2286
      %2288 = vrot.lane.b32.xlu0 %v2246, 127
      %v2289 = vpop.permute.xlu0 %2288
      %2290 = vrot.lane.b32.xlu0 %v2247, 127
      %v2291 = vpop.permute.xlu0 %2290
      %2292 = vrot.lane.b32.xlu0 %v2248, 127
      %v2293 = vpop.permute.xlu0 %2292
      %2294 = vrot.lane.b32.xlu0 %v2249, 127
      %v2295 = vpop.permute.xlu0 %2294
      %2296 = vrot.lane.b32.xlu0 %v2250, 127
      %v2297 = vpop.permute.xlu0 %2296
      %2298 = vrot.lane.b32.xlu0 %v2251, 127
      %v2299 = vpop.permute.xlu0 %2298
      %v2316 = vmax.f32 %v2236, %v2269
      %v2317 = vmax.f32 %v2237, %v2271
      %v2318 = vmax.f32 %v2238, %v2273
      %v2319 = vmax.f32 %v2239, %v2275
      %v2320 = vmax.f32 %v2240, %v2277
      %v2321 = vmax.f32 %v2241, %v2279
      %v2322 = vmax.f32 %v2242, %v2281
      %v2323 = vmax.f32 %v2243, %v2283
      %v2324 = vmax.f32 %v2244, %v2285
      %v2325 = vmax.f32 %v2245, %v2287
      %v2326 = vmax.f32 %v2246, %v2289
      %v2327 = vmax.f32 %v2247, %v2291
      %v2328 = vmax.f32 %v2248, %v2293
      %v2329 = vmax.f32 %v2249, %v2295
      %v2330 = vmax.f32 %v2250, %v2297
      %v2331 = vmax.f32 %v2251, %v2299
      %v2332 = vsub.f32 %v2236, %v2316
      %v2333 = vsub.f32 %v2237, %v2317
      %v2334 = vsub.f32 %v2238, %v2318
      %v2335 = vsub.f32 %v2239, %v2319
      %v2336 = vsub.f32 %v2240, %v2320
      %v2337 = vsub.f32 %v2241, %v2321
      %v2338 = vsub.f32 %v2242, %v2322
      %v2339 = vsub.f32 %v2243, %v2323
      %v2340 = vsub.f32 %v2244, %v2324
      %v2341 = vsub.f32 %v2245, %v2325
      %v2342 = vsub.f32 %v2246, %v2326
      %v2343 = vsub.f32 %v2247, %v2327
      %v2344 = vsub.f32 %v2248, %v2328
      %v2345 = vsub.f32 %v2249, %v2329
      %v2346 = vsub.f32 %v2250, %v2330
      %v2347 = vsub.f32 %v2251, %v2331
      %v2348 = vmul.f32 %v2332, 1.442695
      %v2349 = vpow.pop %v2348
      %v2350 = vmul.f32 %v2333, 1.442695
      %v2351 = vpow.pop %v2350
      %v2352 = vmul.f32 %v2334, 1.442695
      %v2353 = vpow.pop %v2352
      %v2354 = vmul.f32 %v2335, 1.442695
      %v2355 = vpow.pop %v2354
      %v2356 = vmul.f32 %v2336, 1.442695
      %v2357 = vpow.pop %v2356
      %v2358 = vmul.f32 %v2337, 1.442695
      %v2359 = vpow.pop %v2358
      %v2360 = vmul.f32 %v2338, 1.442695
      %v2361 = vpow.pop %v2360
      %v2362 = vmul.f32 %v2339, 1.442695
      %v2363 = vpow.pop %v2362
      %v2364 = vmul.f32 %v2340, 1.442695
      %v2365 = vpow.pop %v2364
      %v2366 = vmul.f32 %v2341, 1.442695
      %v2367 = vpow.pop %v2366
      %v2368 = vmul.f32 %v2342, 1.442695
      %v2369 = vpow.pop %v2368
      %v2370 = vmul.f32 %v2343, 1.442695
      %v2371 = vpow.pop %v2370
      %v2372 = vmul.f32 %v2344, 1.442695
      %v2373 = vpow.pop %v2372
      %v2374 = vmul.f32 %v2345, 1.442695
      %v2375 = vpow.pop %v2374
      %v2376 = vmul.f32 %v2346, 1.442695
      %v2377 = vpow.pop %v2376
      %v2378 = vmul.f32 %v2347, 1.442695
      %v2379 = vpow.pop %v2378
      %2396 = vrot.lane.b32.xlu0 %v2316, 1
      %v2397 = vpop.permute.xlu0 %2396
      %2398 = vrot.lane.b32.xlu0 %v2317, 1
      %v2399 = vpop.permute.xlu0 %2398
      %2400 = vrot.lane.b32.xlu0 %v2318, 1
      %v2401 = vpop.permute.xlu0 %2400
      %2402 = vrot.lane.b32.xlu0 %v2319, 1
      %v2403 = vpop.permute.xlu0 %2402
      %2404 = vrot.lane.b32.xlu0 %v2320, 1
      %v2405 = vpop.permute.xlu0 %2404
      %2406 = vrot.lane.b32.xlu0 %v2321, 1
      %v2407 = vpop.permute.xlu0 %2406
      %2408 = vrot.lane.b32.xlu0 %v2322, 1
      %v2409 = vpop.permute.xlu0 %2408
      %2410 = vrot.lane.b32.xlu0 %v2323, 1
      %v2411 = vpop.permute.xlu0 %2410
      %2412 = vrot.lane.b32.xlu0 %v2324, 1
      %v2413 = vpop.permute.xlu0 %2412
      %2414 = vrot.lane.b32.xlu0 %v2325, 1
      %v2415 = vpop.permute.xlu0 %2414
      %2416 = vrot.lane.b32.xlu0 %v2326, 1
      %v2417 = vpop.permute.xlu0 %2416
      %2418 = vrot.lane.b32.xlu0 %v2327, 1
      %v2419 = vpop.permute.xlu0 %2418
      %2420 = vrot.lane.b32.xlu0 %v2328, 1
      %v2421 = vpop.permute.xlu0 %2420
      %2422 = vrot.lane.b32.xlu0 %v2329, 1
      %v2423 = vpop.permute.xlu0 %2422
      %2424 = vrot.lane.b32.xlu0 %v2330, 1
      %v2425 = vpop.permute.xlu0 %2424
      %2426 = vrot.lane.b32.xlu0 %v2331, 1
      %v2427 = vpop.permute.xlu0 %2426
      %v2444 = vsub.f32 %v2236, %v2397
      %v2445 = vsub.f32 %v2237, %v2399
      %v2446 = vsub.f32 %v2238, %v2401
      %v2447 = vsub.f32 %v2239, %v2403
      %v2448 = vsub.f32 %v2240, %v2405
      %v2449 = vsub.f32 %v2241, %v2407
      %v2450 = vsub.f32 %v2242, %v2409
      %v2451 = vsub.f32 %v2243, %v2411
      %v2452 = vsub.f32 %v2244, %v2413
      %v2453 = vsub.f32 %v2245, %v2415
      %v2454 = vsub.f32 %v2246, %v2417
      %v2455 = vsub.f32 %v2247, %v2419
      %v2456 = vsub.f32 %v2248, %v2421
      %v2457 = vsub.f32 %v2249, %v2423
      %v2458 = vsub.f32 %v2250, %v2425
      %v2459 = vsub.f32 %v2251, %v2427
      %v2460 = vmul.f32 %v2444, 1.442695
      %v2461 = vpow.pop %v2460
      %v2462 = vmul.f32 %v2445, 1.442695
      %v2463 = vpow.pop %v2462
      %v2464 = vmul.f32 %v2446, 1.442695
      %v2465 = vpow.pop %v2464
      %v2466 = vmul.f32 %v2447, 1.442695
      %v2467 = vpow.pop %v2466
      %v2468 = vmul.f32 %v2448, 1.442695
      %v2469 = vpow.pop %v2468
      %v2470 = vmul.f32 %v2449, 1.442695
      %v2471 = vpow.pop %v2470
      %v2472 = vmul.f32 %v2450, 1.442695
      %v2473 = vpow.pop %v2472
      %v2474 = vmul.f32 %v2451, 1.442695
      %v2475 = vpow.pop %v2474
      %v2476 = vmul.f32 %v2452, 1.442695
      %v2477 = vpow.pop %v2476
      %v2478 = vmul.f32 %v2453, 1.442695
      %v2479 = vpow.pop %v2478
      %v2480 = vmul.f32 %v2454, 1.442695
      %v2481 = vpow.pop %v2480
      %v2482 = vmul.f32 %v2455, 1.442695
      %v2483 = vpow.pop %v2482
      %v2484 = vmul.f32 %v2456, 1.442695
      %v2485 = vpow.pop %v2484
      %v2486 = vmul.f32 %v2457, 1.442695
      %v2487 = vpow.pop %v2486
      %v2488 = vmul.f32 %v2458, 1.442695
      %v2489 = vpow.pop %v2488
      %v2490 = vmul.f32 %v2459, 1.442695
      %v2491 = vpow.pop %v2490
      %2508 = vrot.lane.b32.xlu0 %v2461, 127
      %v2509 = vpop.permute.xlu0 %2508
      %2510 = vrot.lane.b32.xlu0 %v2463, 127
      %v2511 = vpop.permute.xlu0 %2510
      %2512 = vrot.lane.b32.xlu0 %v2465, 127
      %v2513 = vpop.permute.xlu0 %2512
      %2514 = vrot.lane.b32.xlu0 %v2467, 127
      %v2515 = vpop.permute.xlu0 %2514
      %2516 = vrot.lane.b32.xlu0 %v2469, 127
      %v2517 = vpop.permute.xlu0 %2516
      %2518 = vrot.lane.b32.xlu0 %v2471, 127
      %v2519 = vpop.permute.xlu0 %2518
      %2520 = vrot.lane.b32.xlu0 %v2473, 127
      %v2521 = vpop.permute.xlu0 %2520
      %2522 = vrot.lane.b32.xlu0 %v2475, 127
      %v2523 = vpop.permute.xlu0 %2522
      %2524 = vrot.lane.b32.xlu0 %v2477, 127
      %v2525 = vpop.permute.xlu0 %2524
      %2526 = vrot.lane.b32.xlu0 %v2479, 127
      %v2527 = vpop.permute.xlu0 %2526
      %2528 = vrot.lane.b32.xlu0 %v2481, 127
      %v2529 = vpop.permute.xlu0 %2528
      %2530 = vrot.lane.b32.xlu0 %v2483, 127
      %v2531 = vpop.permute.xlu0 %2530
      %2532 = vrot.lane.b32.xlu0 %v2485, 127
      %v2533 = vpop.permute.xlu0 %2532
      %2534 = vrot.lane.b32.xlu0 %v2487, 127
      %v2535 = vpop.permute.xlu0 %2534
      %2536 = vrot.lane.b32.xlu0 %v2489, 127
      %v2537 = vpop.permute.xlu0 %2536
      %2538 = vrot.lane.b32.xlu0 %v2491, 127
      %v2539 = vpop.permute.xlu0 %2538
      %v2556 = vadd.f32 %v2349, %v2509
      %v2557 = vadd.f32 %v2351, %v2511
      %v2558 = vadd.f32 %v2353, %v2513
      %v2559 = vadd.f32 %v2355, %v2515
      %v2560 = vadd.f32 %v2357, %v2517
      %v2561 = vadd.f32 %v2359, %v2519
      %v2562 = vadd.f32 %v2361, %v2521
      %v2563 = vadd.f32 %v2363, %v2523
      %v2564 = vadd.f32 %v2365, %v2525
      %v2565 = vadd.f32 %v2367, %v2527
      %v2566 = vadd.f32 %v2369, %v2529
      %v2567 = vadd.f32 %v2371, %v2531
      %v2568 = vadd.f32 %v2373, %v2533
      %v2569 = vadd.f32 %v2375, %v2535
      %v2570 = vadd.f32 %v2377, %v2537
      %v2571 = vadd.f32 %v2379, %v2539
      %v2572 = vlog2.pop %v2556
      %v2573 = vmul.f32 %v2572, 0.6931472
      %v2574 = vlog2.pop %v2557
      %v2575 = vmul.f32 %v2574, 0.6931472
      %v2576 = vlog2.pop %v2558
      %v2577 = vmul.f32 %v2576, 0.6931472
      %v2578 = vlog2.pop %v2559
      %v2579 = vmul.f32 %v2578, 0.6931472
      %v2580 = vlog2.pop %v2560
      %v2581 = vmul.f32 %v2580, 0.6931472
      %v2582 = vlog2.pop %v2561
      %v2583 = vmul.f32 %v2582, 0.6931472
      %v2584 = vlog2.pop %v2562
      %v2585 = vmul.f32 %v2584, 0.6931472
      %v2586 = vlog2.pop %v2563
      %v2587 = vmul.f32 %v2586, 0.6931472
      %v2588 = vlog2.pop %v2564
      %v2589 = vmul.f32 %v2588, 0.6931472
      %v2590 = vlog2.pop %v2565
      %v2591 = vmul.f32 %v2590, 0.6931472
      %v2592 = vlog2.pop %v2566
      %v2593 = vmul.f32 %v2592, 0.6931472
      %v2594 = vlog2.pop %v2567
      %v2595 = vmul.f32 %v2594, 0.6931472
      %v2596 = vlog2.pop %v2568
      %v2597 = vmul.f32 %v2596, 0.6931472
      %v2598 = vlog2.pop %v2569
      %v2599 = vmul.f32 %v2598, 0.6931472
      %v2600 = vlog2.pop %v2570
      %v2601 = vmul.f32 %v2600, 0.6931472
      %v2602 = vlog2.pop %v2571
      %v2603 = vmul.f32 %v2602, 0.6931472
      %v2604 = vadd.f32 %v2316, %v2573
      %v2605 = vadd.f32 %v2317, %v2575
      %v2606 = vadd.f32 %v2318, %v2577
      %v2607 = vadd.f32 %v2319, %v2579
      %v2608 = vadd.f32 %v2320, %v2581
      %v2609 = vadd.f32 %v2321, %v2583
      %v2610 = vadd.f32 %v2322, %v2585
      %v2611 = vadd.f32 %v2323, %v2587
      %v2612 = vadd.f32 %v2324, %v2589
      %v2613 = vadd.f32 %v2325, %v2591
      %v2614 = vadd.f32 %v2326, %v2593
      %v2615 = vadd.f32 %v2327, %v2595
      %v2616 = vadd.f32 %v2328, %v2597
      %v2617 = vadd.f32 %v2329, %v2599
      %v2618 = vadd.f32 %v2330, %v2601
      %v2619 = vadd.f32 %v2331, %v2603
      %2621 = vset.pattern.permute.xlu0 0
      %2622 = vperm.xlu0 %2621, %v2604
      %v2623 = vpop.permute.xlu0 %2622
      %2626 = vset.pattern.permute.xlu0 0
      %2627 = vperm.xlu0 %2626, %v2605
      %v2628 = vpop.permute.xlu0 %2627
      %2631 = vset.pattern.permute.xlu0 0
      %2632 = vperm.xlu0 %2631, %v2606
      %v2633 = vpop.permute.xlu0 %2632
      %2636 = vset.pattern.permute.xlu0 0
      %2637 = vperm.xlu0 %2636, %v2607
      %v2638 = vpop.permute.xlu0 %2637
      %2641 = vset.pattern.permute.xlu0 0
      %2642 = vperm.xlu0 %2641, %v2608
      %v2643 = vpop.permute.xlu0 %2642
      %2646 = vset.pattern.permute.xlu0 0
      %2647 = vperm.xlu0 %2646, %v2609
      %v2648 = vpop.permute.xlu0 %2647
      %2651 = vset.pattern.permute.xlu0 0
      %2652 = vperm.xlu0 %2651, %v2610
      %v2653 = vpop.permute.xlu0 %2652
      %2656 = vset.pattern.permute.xlu0 0
      %2657 = vperm.xlu0 %2656, %v2611
      %v2658 = vpop.permute.xlu0 %2657
      %2661 = vset.pattern.permute.xlu0 0
      %2662 = vperm.xlu0 %2661, %v2612
      %v2663 = vpop.permute.xlu0 %2662
      %2666 = vset.pattern.permute.xlu0 0
      %2667 = vperm.xlu0 %2666, %v2613
      %v2668 = vpop.permute.xlu0 %2667
      %2671 = vset.pattern.permute.xlu0 0
      %2672 = vperm.xlu0 %2671, %v2614
      %v2673 = vpop.permute.xlu0 %2672
      %2676 = vset.pattern.permute.xlu0 0
      %2677 = vperm.xlu0 %2676, %v2615
      %v2678 = vpop.permute.xlu0 %2677
      %2681 = vset.pattern.permute.xlu0 0
      %2682 = vperm.xlu0 %2681, %v2616
      %v2683 = vpop.permute.xlu0 %2682
      %2686 = vset.pattern.permute.xlu0 0
      %2687 = vperm.xlu0 %2686, %v2617
      %v2688 = vpop.permute.xlu0 %2687
      %2691 = vset.pattern.permute.xlu0 0
      %2692 = vperm.xlu0 %2691, %v2618
      %v2693 = vpop.permute.xlu0 %2692
      %2696 = vset.pattern.permute.xlu0 0
      %2697 = vperm.xlu0 %2696, %v2619
      %v2698 = vpop.permute.xlu0 %2697
      %v2700 = vsub.f32 %v2236, %v2623
      %v2701 = vsub.f32 %v2237, %v2628
      %v2702 = vsub.f32 %v2238, %v2633
      %v2703 = vsub.f32 %v2239, %v2638
      %v2704 = vsub.f32 %v2240, %v2643
      %v2705 = vsub.f32 %v2241, %v2648
      %v2706 = vsub.f32 %v2242, %v2653
      %v2707 = vsub.f32 %v2243, %v2658
      %v2708 = vsub.f32 %v2244, %v2663
      %v2709 = vsub.f32 %v2245, %v2668
      %v2710 = vsub.f32 %v2246, %v2673
      %v2711 = vsub.f32 %v2247, %v2678
      %v2712 = vsub.f32 %v2248, %v2683
      %v2713 = vsub.f32 %v2249, %v2688
      %v2714 = vsub.f32 %v2250, %v2693
      %v2715 = vsub.f32 %v2251, %v2698
      %vm2716 = vcmask 15360
      %2717 = vst.msk [vmem:[%s361] sm:$0xff] %vm2716, %v2700
      %2718 = vst.msk [vmem:[%s361 + $0x8] sm:$0xff] %vm2716, %v2701
      %2719 = vst.msk [vmem:[%s361 + $0x10] sm:$0xff] %vm2716, %v2702
      %2720 = vst.msk [vmem:[%s361 + $0x18] sm:$0xff] %vm2716, %v2703
      %2721 = vst.msk [vmem:[%s361 + $0x20] sm:$0xff] %vm2716, %v2704
      %2722 = vst.msk [vmem:[%s361 + $0x28] sm:$0xff] %vm2716, %v2705
      %2723 = vst.msk [vmem:[%s361 + $0x30] sm:$0xff] %vm2716, %v2706
      %2724 = vst.msk [vmem:[%s361 + $0x38] sm:$0xff] %vm2716, %v2707
      %2725 = vst.msk [vmem:[%s361 + $0x40] sm:$0xff] %vm2716, %v2708
      %2726 = vst.msk [vmem:[%s361 + $0x48] sm:$0xff] %vm2716, %v2709
      %2727 = vst.msk [vmem:[%s361 + $0x50] sm:$0xff] %vm2716, %v2710
      %2728 = vst.msk [vmem:[%s361 + $0x58] sm:$0xff] %vm2716, %v2711
      %2729 = vst.msk [vmem:[%s361 + $0x60] sm:$0xff] %vm2716, %v2712
      %2730 = vst.msk [vmem:[%s361 + $0x68] sm:$0xff] %vm2716, %v2713
      %2731 = vst.msk [vmem:[%s361 + $0x70] sm:$0xff] %vm2716, %v2714
      %2732 = vst.msk [vmem:[%s361 + $0x78] sm:$0xff] %vm2716, %v2715
      %s2733 = smul.u32 16, %s21
      %p2734 = scmp.lt.s32.totalorder %s2733, 31
      %s2735 = scalar_select %p2734, %s2733, 31
      %s2736 = smul.addr %s2735, 8
      %s2737 = scalar_lea.vmem %s10, %s2736
      // Predicated region
      $region61: #{deepfm_forward.1} parent=59 // pred_check
        %p2738 = pneg %p254
      $region62: #{deepfm_forward.1} parent=59 // pred_check_branch
        %2740 = sbr.rel (%p2738) target = $region64
      $region63: #{deepfm_forward.1} parent=59 // pred_region
        %s2741 = smul.u32 16, %s21
      $region64: #{deepfm_forward.1} parent=59 // pred_fallthru
        _
    $region60: #{deepfm_forward.1} parent=5 // pred_fallthru
      _
    %p2742 = scmp.le.s32.totalorder 2, %s16
    // Predicated region
    $region65: #{deepfm_forward.1} parent=5 // pred_check
      %p2743 = pneg %p2742
    $region66: #{deepfm_forward.1} parent=5 // pred_check_branch
      %2745 = sbr.rel (%p2743) target = $region68
    $region67: #{deepfm_forward.1} parent=5 // pred_region
      %s2746 = ssub.s32 %s16, 2
      // Predicated region
      $region69: #{deepfm_forward.1} parent=67 // pred_check
        %p2747 = pneg %p260
      $region70: #{deepfm_forward.1} parent=67 // pred_check_branch
        %2749 = sbr.rel (%p2747) target = $region72
      $region71: #{deepfm_forward.1} parent=67 // pred_region
        %s2750 = smul.u32 16, %s22
        %p2751 = scmp.lt.s32.totalorder %s2750, 31
        %s2752 = scalar_select %p2751, %s2750, 31
        %s2753 = smul.addr %s2752, 8
        %s2754 = scalar_lea.vmem %s10, %s2753
      $region72: #{deepfm_forward.1} parent=67 // pred_fallthru
        _
    $region68: #{deepfm_forward.1} parent=5 // pred_fallthru
      _
  $region6: #{deepfm_forward.1} parent=0 // loop_footer
    %s20 = sadd.s32 1, %s16
  $region7: #{deepfm_forward.1} parent=0 // loop_footer_branch
    %15 = sbr.rel target = $region3
  $region8: #{deepfm_forward.1} parent=0 // loop_exit
    _

</llo_original>
